<compile_context>
chip_gen: v6e
topology: v6e:2x2x1
jax: 0.10.0
libtpu: 0.0.40
codegen_flags: <defaults>
</compile_context>

<pallas_src>
import math
from functools import partial

import jax
import jax.numpy as jnp
import numpy as np
from jax import lax
from jax.experimental import pallas as pl
from jax.experimental.pallas import tpu as pltpu

GN_GROUPS = 32     # normalization(channels) == GroupNorm32(32, channels)
GN_EPS = 1e-5

_TN = (((0,), (0,)), ((), ()))   # contract dim 0 of both operands  (== lhs.T @ rhs)
_NT = (((1,), (1,)), ((), ()))   # contract dim 1 of both operands  (== lhs @ rhs.T)


def _attn_block_kernel(x_ref, gmat_ref, wq_ref, bq_ref, wk_ref, bk_ref,
                       wv_ref, bv_ref, gamma_ref, beta_ref, wpt_ref, bproj_ref,
                       o_ref,
                       xn_s, k_s, v_s, q_s, a_s,
                       *, num_heads, tq, gn_eps):
    """grid = (batch, t, query_tile, head).  All accumulation in float32."""
    qt = pl.program_id(2)
    h = pl.program_id(3)
    C, S = xn_s.shape
    ch = C // num_heads

    # ---- per-(b, t) init: two-pass GroupNorm + K/V projections, cached bf16 ----
    @pl.when(jnp.logical_and(qt == 0, h == 0))
    def _init():
        x = x_ref[0]                                             # (C, S) f32
        s1 = jnp.sum(x, axis=1, keepdims=True)                   # (C, 1)
        # gmat[i, j] = 1/(cg*S) iff channels i, j share a group -> per-group mean
        mean_c = jnp.dot(gmat_ref[...], s1,
                         preferred_element_type=jnp.float32)     # (C, 1)
        d = x - mean_c                                           # centered (two-pass var)
        s2 = jnp.sum(d * d, axis=1, keepdims=True)               # (C, 1)
        var_c = jnp.dot(gmat_ref[...], s2,
                        preferred_element_type=jnp.float32)      # (C, 1)
        scale = lax.rsqrt(var_c + gn_eps) * gamma_ref[...]       # (C, 1)
        xn = (d * scale + beta_ref[...]).astype(jnp.bfloat16)    # (C, S)
        xn_s[...] = xn
        k = jnp.dot(wk_ref[...], xn, preferred_element_type=jnp.float32) + bk_ref[...]
        v = jnp.dot(wv_ref[...], xn, preferred_element_type=jnp.float32) + bv_ref[...]
        k_s[...] = k.astype(jnp.bfloat16)                        # flat (C, S), head-major rows
        v_s[...] = v.astype(jnp.bfloat16)

    # ---- per query tile (h == 0): ONE full-width Q projection, cached bf16 ----
    q0 = pl.multiple_of(qt * tq, tq)

    @pl.when(h == 0)
    def _project_q():
        xn_q = xn_s[:, pl.ds(q0, tq)]                            # (C, TQ) bf16
        qf = jnp.dot(wq_ref[...], xn_q,
                     preferred_element_type=jnp.float32) + bq_ref[...]
        q_s[...] = qf.astype(jnp.bfloat16)                       # attn scale pre-folded into Wq/bq

    # ---- this head: scores, softmax, attn @ V ----
    c0 = pl.multiple_of(h * ch, ch)
    q_h = q_s[pl.ds(c0, ch), :]                                  # (ch, TQ) bf16
    k_h = k_s[pl.ds(c0, ch), :]                                  # (ch, S)  bf16
    v_h = v_s[pl.ds(c0, ch), :]                                  # (ch, S)  bf16

    # scores[t, s] = sum_c q[c, t] * k[c, s]   (no materialized transpose)
    s = lax.dot_general(q_h, k_h, _TN, preferred_element_type=jnp.float32)   # (TQ, S)
    s = s - jnp.max(s, axis=-1, keepdims=True)
    e = jnp.exp(s)                                               # f32 (v5e has no bf16 EUP path)
    p = e * pl.reciprocal(jnp.sum(e, axis=-1, keepdims=True), approx=True)
    p = p.astype(jnp.bfloat16)

    # a[c, t] = sum_s v[c, s] * p[t, s]
    a = lax.dot_general(v_h, p, _NT, preferred_element_type=jnp.float32)     # (ch, TQ)
    a_s[pl.ds(c0, ch), :] = a.astype(jnp.bfloat16)

    # ---- last head: single full-width proj_out matmul + bias + residual ----
    @pl.when(h == num_heads - 1)
    def _finalize():
        hp = lax.dot_general(wpt_ref[...], a_s[...], _TN,
                             preferred_element_type=jnp.float32)             # (C, TQ)
        x_blk = x_ref[0, :, pl.ds(q0, tq)]                                   # (C, TQ) f32
        o_ref[0] = x_blk + hp + bproj_ref[...]


def _tq_budget():
    """Query-tile budget per TPU generation (VMEM-driven)."""
    try:
        cap = getattr(pltpu.get_tpu_info(), "vmem_capacity_bytes", None)
        if cap is not None and cap <= 64 * 1024 * 1024:     # v7x: 64 MiB / core
            return 256
    except Exception:
        pass
    return 1024                                              # v5e / v6e: 128 MiB


def _vmem_limit_bytes():
    """Scoped-VMEM limit: ~3/4 of the chip's VMEM (leave compiler headroom)."""
    try:
        cap = getattr(pltpu.get_tpu_info(), "vmem_capacity_bytes", None)
        if cap is not None:
            return int(cap) * 3 // 4
    except Exception:
        pass
    return None


def _pick_tq(S, tq):
    if tq is not None:
        assert S % tq == 0 and (tq == S or tq % 128 == 0), \
            "query tile must divide S and be lane-aligned (or equal S)"
        return tq
    budget = _tq_budget()
    if S <= budget:
        return S
    best = 0
    d = 128
    while d <= budget:
        if S % d == 0:
            best = d
        d += 128
    return best if best else S        # no lane-aligned divisor: single tile over S


def spatial_attention_block(x, params, num_heads, tq=None):
    """x: (b, c, t, h, w) float32 (NCTHW, matching the PyTorch module)."""
    wqkv, bqkv, gamma, beta, wproj, bproj = params
    b, c, t, hh, ww = x.shape
    S = hh * ww
    assert c % GN_GROUPS == 0 and c % num_heads == 0
    ch = c // num_heads
    cg = c // GN_GROUPS
    tq = _pick_tq(S, tq)
    n_qt = S // tq

    # ---- layout: skip the HBM transpose whenever the per-(b,t) slab is a
    # lane-aligned last-dim block of (b, c, t*S).
    direct = (t == 1) or (S % 128 == 0 and tq % 128 == 0)
    if direct:
        x3 = x.reshape(b, c, t * S).astype(jnp.float32)          # contiguous reshape only
        Bo, To = b, t
    else:
        # TODO(synk): odd spatial sizes (S % 128 != 0) with t > 1 still pay the
        # host transpose; an Element-indexed spec could remove it too.
        x3 = jnp.transpose(x, (0, 2, 1, 3, 4)).reshape(b * t, c, S).astype(jnp.float32)
        Bo, To = b * t, 1

    # ---- host-side weight prep (one-time, tiny) ----
    # Split interleaved per-head qkv rows into head-major q/k/v blocks and fold
    # the 1/sqrt(sqrt(ch)) attention scale into the q/k weights + biases.
    scale = 1.0 / math.sqrt(math.sqrt(ch))
    w3 = wqkv.reshape(num_heads, 3, ch, c).astype(jnp.float32)
    b3 = bqkv.reshape(num_heads, 3, ch).astype(jnp.float32)
    wq = (w3[:, 0] * scale).reshape(c, c).astype(jnp.bfloat16)
    wk = (w3[:, 1] * scale).reshape(c, c).astype(jnp.bfloat16)
    wv = w3[:, 2].reshape(c, c).astype(jnp.bfloat16)
    bq = (b3[:, 0] * scale).reshape(c, 1)
    bk = (b3[:, 1] * scale).reshape(c, 1)
    bv = b3[:, 2].reshape(c, 1)
    wpt = jnp.transpose(wproj).astype(jnp.bfloat16)              # (c_in, c_out)
    # Group-averaging matrix: gmat @ per-channel-sums = per-channel group mean.
    gidx = np.arange(c) // cg
    gmat = jnp.asarray((gidx[:, None] == gidx[None, :]).astype(np.float32) / (cg * S))

    kernel = partial(_attn_block_kernel, num_heads=num_heads, tq=tq, gn_eps=GN_EPS)
    rep = lambda bi, ti, qi, hi: (0, 0)

    flops = 2 * b * t * c * S * (4 * c + 2 * S)                  # qkv/proj + scores + attn@V
    cost = pl.CostEstimate(
        flops=flops,
        transcendentals=b * t * num_heads * S * S,               # softmax exp
        bytes_accessed=2 * b * t * c * S * 4 + 5 * c * c * 4)

    out = pl.pallas_call(
        kernel,
        out_shape=jax.ShapeDtypeStruct((Bo, c, To * S), jnp.float32),
        grid_spec=pltpu.PrefetchScalarGridSpec(
            num_scalar_prefetch=0,
            grid=(Bo, To, n_qt, num_heads),
            in_specs=[
                # full-S x slab per (b, t); resident across the q-tile/head axes.
                # TODO(synk): on v7x at c=512, S>=4k consider pipeline_mode=
                # pl.Buffered(1) here (or a flash-style KV-tile axis) to shrink
                # its double-buffered f32 VMEM footprint.
                pl.BlockSpec((1, c, S), lambda bi, ti, qi, hi: (bi, 0, ti)),
                pl.BlockSpec((c, c), rep),   # group-mean matrix
                pl.BlockSpec((c, c), rep),   # Wq   (full width; Q hoisted per tile)
                pl.BlockSpec((c, 1), rep),   # bq
                pl.BlockSpec((c, c), rep),   # Wk
                pl.BlockSpec((c, 1), rep),   # bk
                pl.BlockSpec((c, c), rep),   # Wv
                pl.BlockSpec((c, 1), rep),   # bv
                pl.BlockSpec((c, 1), rep),   # gamma
                pl.BlockSpec((c, 1), rep),   # beta
                pl.BlockSpec((c, c), rep),   # Wproj^T (full width; one matmul per tile)
                pl.BlockSpec((c, 1), rep),   # bproj
            ],
            out_specs=pl.BlockSpec(
                (1, c, tq), lambda bi, ti, qi, hi: (bi, 0, ti * n_qt + qi)),
            scratch_shapes=[
                pltpu.VMEM((c, S), jnp.bfloat16),    # xn cache  (per (b,t))
                pltpu.VMEM((c, S), jnp.bfloat16),    # K cache   (flat, head-major rows)
                pltpu.VMEM((c, S), jnp.bfloat16),    # V cache
                pltpu.VMEM((c, tq), jnp.bfloat16),   # Q tile    (all heads)
                pltpu.VMEM((c, tq), jnp.bfloat16),   # per-head attention outputs
            ],
        ),
        compiler_params=pltpu.CompilerParams(
            # (b, t) are safe to split across TensorCores; q-tile / head axes
            # reuse per-(b,t) VMEM scratch -> "arbitrary".
            dimension_semantics=("parallel", "parallel", "arbitrary", "arbitrary"),
            vmem_limit_bytes=_vmem_limit_bytes(),
        ),
        cost_estimate=cost,
    )(x3, gmat, wq, bq, wk, bk, wv, bv,
      gamma.reshape(c, 1).astype(jnp.float32),
      beta.reshape(c, 1).astype(jnp.float32),
      wpt, bproj.reshape(c, 1).astype(jnp.float32))

    if direct:
        return out.reshape(b, c, t, hh, ww)
    return out.reshape(b, t, c, hh, ww).transpose(0, 2, 1, 3, 4)


def reference(x, params, num_heads):
    """Pure-JAX (float32) replica of the PyTorch forward, for verification."""
    wqkv, bqkv, gamma, beta, wproj, bproj = params
    b, c, t, hh, ww = x.shape
    B, S = b * t, hh * ww
    x2 = jnp.transpose(x, (0, 2, 1, 3, 4)).reshape(B, c, S)
    cg = c // GN_GROUPS
    xg = x2.reshape(B, GN_GROUPS, cg * S)
    mean = xg.mean(-1, keepdims=True)
    var = ((xg - mean) ** 2).mean(-1, keepdims=True)
    xn = ((xg - mean) / jnp.sqrt(var + GN_EPS)).reshape(B, c, S)
    xn = xn * gamma[None, :, None] + beta[None, :, None]
    qkv = jnp.einsum('oc,bcs->bos', wqkv, xn) + bqkv[None, :, None]
    ch = c // num_heads
    qkv_h = qkv.reshape(B * num_heads, 3 * ch, S)
    q, k, v = qkv_h[:, :ch], qkv_h[:, ch:2 * ch], qkv_h[:, 2 * ch:]
    scale = 1.0 / math.sqrt(math.sqrt(ch))
    wt = jax.nn.softmax(jnp.einsum('bct,bcs->bts', q * scale, k * scale), axis=-1)
    a = jnp.einsum('bts,bcs->bct', wt, v).reshape(B, c, S)
    hp = jnp.einsum('oc,bcs->bos', wproj, a) + bproj[None, :, None]
    return (x2 + hp).reshape(b, t, c, hh, ww).transpose(0, 2, 1, 3, 4)


if __name__ == "__main__":
    C, NUM_HEADS = 64, 4            # ch = 16 (bf16 sublane-tile aligned), 32 groups (cg = 2)
    b, t, hh, ww = 2, 2, 16, 16     # S = 256 -> two lane-aligned query tiles of 128

    key = jax.random.PRNGKey(0)
    kx, k1, k2, k3, k4, k5, k6 = jax.random.split(key, 7)
    x = jax.random.normal(kx, (b, C, t, hh, ww), jnp.float32)

    # Deterministic synthetic parameters (shapes from the module's __init__).
    wqkv = jax.random.normal(k1, (3 * C, C), jnp.float32) * 0.15   # Conv1d(C, 3C, 1)
    bqkv = jax.random.normal(k2, (3 * C,), jnp.float32) * 0.2
    gamma = 1.0 + 0.2 * jax.random.normal(k5, (C,), jnp.float32)   # GroupNorm affine
    beta = 0.2 * jax.random.normal(k6, (C,), jnp.float32)
    # NOTE: the original zero_module() zero-inits proj_out; nonzero values are
    # used so the attention path is actually exercised by the check.
    wproj = jax.random.normal(k3, (C, C), jnp.float32) * 0.1       # Conv1d(C, C, 1)
    bproj = jax.random.normal(k4, (C,), jnp.float32) * 0.1
    params = (wqkv, bqkv, gamma, beta, wproj, bproj)

    out = jax.block_until_ready(spatial_attention_block(x, params, NUM_HEADS, tq=128))
    ref = jax.block_until_ready(reference(x, params, NUM_HEADS))
    assert out.shape == x.shape
    # bf16 MXU operands + approx-reciprocal softmax vs f32 reference -> loose tol.
    np.testing.assert_allclose(np.asarray(out), np.asarray(ref), atol=3e-2, rtol=3e-2)
    print("KERNEL_OK")
</pallas_src>

<mosaic_0001>
module attributes {stable_mosaic.version = 11 : i64} {
  func.func @_attn_block_kernel(%arg0: i32, %arg1: i32, %arg2: i32, %arg3: i32, %arg4: memref<1x64x256xf32, #tpu.memory_space<vmem>>, %arg5: memref<64x64xf32, #tpu.memory_space<vmem>>, %arg6: memref<64x64xbf16, #tpu.memory_space<vmem>>, %arg7: memref<64x1xf32, #tpu.memory_space<vmem>>, %arg8: memref<64x64xbf16, #tpu.memory_space<vmem>>, %arg9: memref<64x1xf32, #tpu.memory_space<vmem>>, %arg10: memref<64x64xbf16, #tpu.memory_space<vmem>>, %arg11: memref<64x1xf32, #tpu.memory_space<vmem>>, %arg12: memref<64x1xf32, #tpu.memory_space<vmem>>, %arg13: memref<64x1xf32, #tpu.memory_space<vmem>>, %arg14: memref<64x64xbf16, #tpu.memory_space<vmem>>, %arg15: memref<64x1xf32, #tpu.memory_space<vmem>>, %arg16: memref<1x64x128xf32, #tpu.memory_space<vmem>>, %arg17: memref<64x256xbf16, #tpu.memory_space<vmem>>, %arg18: memref<64x256xbf16, #tpu.memory_space<vmem>>, %arg19: memref<64x256xbf16, #tpu.memory_space<vmem>>, %arg20: memref<64x128xbf16, #tpu.memory_space<vmem>>, %arg21: memref<64x128xbf16, #tpu.memory_space<vmem>>) attributes {dimension_semantics = [#tpu.dimension_semantics<parallel>, #tpu.dimension_semantics<parallel>, #tpu.dimension_semantics<arbitrary>, #tpu.dimension_semantics<arbitrary>], iteration_bounds = array<i64: 2, 2, 2, 4>, scalar_prefetch = 0 : i64, scratch_operands = 5 : i64, tpu.core_type = #tpu.core_type<tc>, window_params = [{transform_indices = @transform_0, window_bounds = array<i64: 1, 64, 256>}, {pipeline_mode = #tpu.pipeline_mode<synchronous>, transform_indices = @transform_1, window_bounds = array<i64: 64, 64>}, {pipeline_mode = #tpu.pipeline_mode<synchronous>, transform_indices = @transform_2, window_bounds = array<i64: 64, 64>}, {pipeline_mode = #tpu.pipeline_mode<synchronous>, transform_indices = @transform_3, window_bounds = array<i64: 64, 1>}, {pipeline_mode = #tpu.pipeline_mode<synchronous>, transform_indices = @transform_4, window_bounds = array<i64: 64, 64>}, {pipeline_mode = #tpu.pipeline_mode<synchronous>, transform_indices = @transform_5, window_bounds = array<i64: 64, 1>}, {pipeline_mode = #tpu.pipeline_mode<synchronous>, transform_indices = @transform_6, window_bounds = array<i64: 64, 64>}, {pipeline_mode = #tpu.pipeline_mode<synchronous>, transform_indices = @transform_7, window_bounds = array<i64: 64, 1>}, {pipeline_mode = #tpu.pipeline_mode<synchronous>, transform_indices = @transform_8, window_bounds = array<i64: 64, 1>}, {pipeline_mode = #tpu.pipeline_mode<synchronous>, transform_indices = @transform_9, window_bounds = array<i64: 64, 1>}, {pipeline_mode = #tpu.pipeline_mode<synchronous>, transform_indices = @transform_10, window_bounds = array<i64: 64, 64>}, {pipeline_mode = #tpu.pipeline_mode<synchronous>, transform_indices = @transform_11, window_bounds = array<i64: 64, 1>}, {transform_indices = @transform_12, window_bounds = array<i64: 1, 64, 128>}]} {
    %c0_i32 = arith.constant 0 : i32
    %0 = arith.cmpi eq, %arg2, %c0_i32 : i32
    %c0_i32_0 = arith.constant 0 : i32
    %1 = arith.cmpi eq, %arg3, %c0_i32_0 : i32
    %2 = arith.andi %0, %1 : i1
    %3 = arith.extui %2 : i1 to i32
    %c0_i32_1 = arith.constant 0 : i32
    %4 = arith.cmpi ne, %3, %c0_i32_1 : i32
    scf.if %4 {
      %c0_11 = arith.constant 0 : index
      %c0_12 = arith.constant 0 : index
      %c0_13 = arith.constant 0 : index
      %37 = vector.load %arg4[%c0_11, %c0_12, %c0_13] : memref<1x64x256xf32, #tpu.memory_space<vmem>>, vector<1x64x256xf32>
      %38 = vector.shape_cast %37 : vector<1x64x256xf32> to vector<64x256xf32>
      %cst_14 = arith.constant dense<0.000000e+00> : vector<64xf32>
      %39 = vector.multi_reduction <add>, %38, %cst_14 [1] : vector<64x256xf32> to vector<64xf32>
      %40 = vector.shape_cast %39 : vector<64xf32> to vector<64x1xf32>
      %c0_15 = arith.constant 0 : index
      %c0_16 = arith.constant 0 : index
      %41 = vector.load %arg5[%c0_15, %c0_16] : memref<64x64xf32, #tpu.memory_space<vmem>>, vector<64x64xf32>
      %cst_17 = arith.constant dense<0.000000e+00> : vector<64x1xf32>
      %42 = tpu.matmul %41, %40, %cst_17 {dimension_numbers = #tpu.dot_dimension_numbers<[1], [0], [0], [1], [0, 0, 1, 1], [], []>} : vector<64x64xf32>, vector<64x1xf32>, vector<64x1xf32> -> vector<64x1xf32>
      %43 = vector.broadcast %42 : vector<64x1xf32> to vector<64x256xf32>
      %44 = arith.subf %38, %43 : vector<64x256xf32>
      %45 = arith.mulf %44, %44 : vector<64x256xf32>
      %cst_18 = arith.constant dense<0.000000e+00> : vector<64xf32>
      %46 = vector.multi_reduction <add>, %45, %cst_18 [1] : vector<64x256xf32> to vector<64xf32>
      %47 = vector.shape_cast %46 : vector<64xf32> to vector<64x1xf32>
      %c0_19 = arith.constant 0 : index
      %c0_20 = arith.constant 0 : index
      %48 = vector.load %arg5[%c0_19, %c0_20] : memref<64x64xf32, #tpu.memory_space<vmem>>, vector<64x64xf32>
      %cst_21 = arith.constant dense<0.000000e+00> : vector<64x1xf32>
      %49 = tpu.matmul %48, %47, %cst_21 {dimension_numbers = #tpu.dot_dimension_numbers<[1], [0], [0], [1], [0, 0, 1, 1], [], []>} : vector<64x64xf32>, vector<64x1xf32>, vector<64x1xf32> -> vector<64x1xf32>
      %cst_22 = arith.constant 9.99999974E-6 : f32
      %50 = vector.broadcast %cst_22 : f32 to vector<64x1xf32>
      %51 = arith.addf %49, %50 : vector<64x1xf32>
      %52 = math.rsqrt %51 : vector<64x1xf32>
      %c0_23 = arith.constant 0 : index
      %c0_24 = arith.constant 0 : index
      %53 = vector.load %arg12[%c0_23, %c0_24] : memref<64x1xf32, #tpu.memory_space<vmem>>, vector<64x1xf32>
      %54 = arith.mulf %52, %53 : vector<64x1xf32>
      %55 = vector.broadcast %54 : vector<64x1xf32> to vector<64x256xf32>
      %56 = arith.mulf %44, %55 : vector<64x256xf32>
      %c0_25 = arith.constant 0 : index
      %c0_26 = arith.constant 0 : index
      %57 = vector.load %arg13[%c0_25, %c0_26] : memref<64x1xf32, #tpu.memory_space<vmem>>, vector<64x1xf32>
      %58 = vector.broadcast %57 : vector<64x1xf32> to vector<64x256xf32>
      %59 = arith.addf %56, %58 : vector<64x256xf32>
      %60 = arith.truncf %59 : vector<64x256xf32> to vector<64x256xbf16>
      %c0_27 = arith.constant 0 : index
      %c0_28 = arith.constant 0 : index
      %61 = vector.load %arg17[%c0_27, %c0_28] : memref<64x256xbf16, #tpu.memory_space<vmem>>, vector<64x256xbf16>
      tpu.vector_store %arg17[%c0_27, %c0_28], %60 {strides = array<i32>} : memref<64x256xbf16, #tpu.memory_space<vmem>>, vector<64x256xbf16>,
      %c0_29 = arith.constant 0 : index
      %c0_30 = arith.constant 0 : index
      %62 = vector.load %arg8[%c0_29, %c0_30] : memref<64x64xbf16, #tpu.memory_space<vmem>>, vector<64x64xbf16>
      %cst_31 = arith.constant dense<0.000000e+00> : vector<64x256xf32>
      %63 = tpu.matmul %62, %60, %cst_31 {dimension_numbers = #tpu.dot_dimension_numbers<[1], [0], [0], [1], [0, 0, 1, 1], [], []>} : vector<64x64xbf16>, vector<64x256xbf16>, vector<64x256xf32> -> vector<64x256xf32>
      %c0_32 = arith.constant 0 : index
      %c0_33 = arith.constant 0 : index
      %64 = vector.load %arg9[%c0_32, %c0_33] : memref<64x1xf32, #tpu.memory_space<vmem>>, vector<64x1xf32>
      %65 = vector.broadcast %64 : vector<64x1xf32> to vector<64x256xf32>
      %66 = arith.addf %63, %65 : vector<64x256xf32>
      %c0_34 = arith.constant 0 : index
      %c0_35 = arith.constant 0 : index
      %67 = vector.load %arg10[%c0_34, %c0_35] : memref<64x64xbf16, #tpu.memory_space<vmem>>, vector<64x64xbf16>
      %cst_36 = arith.constant dense<0.000000e+00> : vector<64x256xf32>
      %68 = tpu.matmul %67, %60, %cst_36 {dimension_numbers = #tpu.dot_dimension_numbers<[1], [0], [0], [1], [0, 0, 1, 1], [], []>} : vector<64x64xbf16>, vector<64x256xbf16>, vector<64x256xf32> -> vector<64x256xf32>
      %c0_37 = arith.constant 0 : index
      %c0_38 = arith.constant 0 : index
      %69 = vector.load %arg11[%c0_37, %c0_38] : memref<64x1xf32, #tpu.memory_space<vmem>>, vector<64x1xf32>
      %70 = vector.broadcast %69 : vector<64x1xf32> to vector<64x256xf32>
      %71 = arith.addf %68, %70 : vector<64x256xf32>
      %72 = arith.truncf %66 : vector<64x256xf32> to vector<64x256xbf16>
      %c0_39 = arith.constant 0 : index
      %c0_40 = arith.constant 0 : index
      %73 = vector.load %arg18[%c0_39, %c0_40] : memref<64x256xbf16, #tpu.memory_space<vmem>>, vector<64x256xbf16>
      tpu.vector_store %arg18[%c0_39, %c0_40], %72 {strides = array<i32>} : memref<64x256xbf16, #tpu.memory_space<vmem>>, vector<64x256xbf16>,
      %74 = arith.truncf %71 : vector<64x256xf32> to vector<64x256xbf16>
      %c0_41 = arith.constant 0 : index
      %c0_42 = arith.constant 0 : index
      %75 = vector.load %arg19[%c0_41, %c0_42] : memref<64x256xbf16, #tpu.memory_space<vmem>>, vector<64x256xbf16>
      tpu.vector_store %arg19[%c0_41, %c0_42], %74 {strides = array<i32>} : memref<64x256xbf16, #tpu.memory_space<vmem>>, vector<64x256xbf16>,
    } else {
    }
    %c128_i32 = arith.constant 128 : i32
    %5 = arith.muli %arg2, %c128_i32 : i32
    %6 = tpu.assume_multiple %5, 128 : i32
    %c0_i32_2 = arith.constant 0 : i32
    %7 = arith.cmpi eq, %arg3, %c0_i32_2 : i32
    %8 = arith.extui %7 : i1 to i32
    %c0_i32_3 = arith.constant 0 : i32
    %9 = arith.cmpi ne, %8, %c0_i32_3 : i32
    scf.if %9 {
      %c0_11 = arith.constant 0 : index
      %37 = arith.index_cast %6 : i32 to index
      %38 = vector.load %arg17[%c0_11, %37] : memref<64x256xbf16, #tpu.memory_space<vmem>>, vector<64x128xbf16>
      %c0_12 = arith.constant 0 : index
      %c0_13 = arith.constant 0 : index
      %39 = vector.load %arg6[%c0_12, %c0_13] : memref<64x64xbf16, #tpu.memory_space<vmem>>, vector<64x64xbf16>
      %cst_14 = arith.constant dense<0.000000e+00> : vector<64x128xf32>
      %40 = tpu.matmul %39, %38, %cst_14 {dimension_numbers = #tpu.dot_dimension_numbers<[1], [0], [0], [1], [0, 0, 1, 1], [], []>} : vector<64x64xbf16>, vector<64x128xbf16>, vector<64x128xf32> -> vector<64x128xf32>
      %c0_15 = arith.constant 0 : index
      %c0_16 = arith.constant 0 : index
      %41 = vector.load %arg7[%c0_15, %c0_16] : memref<64x1xf32, #tpu.memory_space<vmem>>, vector<64x1xf32>
      %42 = vector.broadcast %41 : vector<64x1xf32> to vector<64x128xf32>
      %43 = arith.addf %40, %42 : vector<64x128xf32>
      %44 = arith.truncf %43 : vector<64x128xf32> to vector<64x128xbf16>
      %c0_17 = arith.constant 0 : index
      %c0_18 = arith.constant 0 : index
      %45 = vector.load %arg20[%c0_17, %c0_18] : memref<64x128xbf16, #tpu.memory_space<vmem>>, vector<64x128xbf16>
      tpu.vector_store %arg20[%c0_17, %c0_18], %44 {strides = array<i32>} : memref<64x128xbf16, #tpu.memory_space<vmem>>, vector<64x128xbf16>,
    } else {
    }
    %c16_i32 = arith.constant 16 : i32
    %10 = arith.muli %arg3, %c16_i32 : i32
    %11 = tpu.assume_multiple %10, 16 : i32
    %12 = arith.index_cast %11 : i32 to index
    %c0 = arith.constant 0 : index
    %13 = vector.load %arg20[%12, %c0] : memref<64x128xbf16, #tpu.memory_space<vmem>>, vector<16x128xbf16>
    %14 = arith.index_cast %11 : i32 to index
    %c0_4 = arith.constant 0 : index
    %15 = vector.load %arg18[%14, %c0_4] : memref<64x256xbf16, #tpu.memory_space<vmem>>, vector<16x256xbf16>
    %16 = arith.index_cast %11 : i32 to index
    %c0_5 = arith.constant 0 : index
    %17 = vector.load %arg19[%16, %c0_5] : memref<64x256xbf16, #tpu.memory_space<vmem>>, vector<16x256xbf16>
    %cst = arith.constant dense<0.000000e+00> : vector<128x256xf32>
    %18 = tpu.matmul %13, %15, %cst {dimension_numbers = #tpu.dot_dimension_numbers<[0], [0], [1], [1], [0, 1, 1, 1], [], []>} : vector<16x128xbf16>, vector<16x256xbf16>, vector<128x256xf32> -> vector<128x256xf32>
    %cst_6 = arith.constant dense<0xFF800000> : vector<128xf32>
    %19 = vector.multi_reduction <maximumf>, %18, %cst_6 [1] : vector<128x256xf32> to vector<128xf32>
    %20 = vector.shape_cast %19 : vector<128xf32> to vector<128x1xf32>
    %21 = vector.broadcast %20 : vector<128x1xf32> to vector<128x256xf32>
    %22 = arith.subf %18, %21 : vector<128x256xf32>
    %23 = math.exp %22 : vector<128x256xf32>
    %cst_7 = arith.constant dense<0.000000e+00> : vector<128xf32>
    %24 = vector.multi_reduction <add>, %23, %cst_7 [1] : vector<128x256xf32> to vector<128xf32>
    %25 = vector.shape_cast %24 : vector<128xf32> to vector<128x1xf32>
    %26 = tpu.reciprocal %25 {approx = true} : vector<128x1xf32> -> vector<128x1xf32>
    %27 = vector.broadcast %26 : vector<128x1xf32> to vector<128x256xf32>
    %28 = arith.mulf %23, %27 : vector<128x256xf32>
    %29 = arith.truncf %28 : vector<128x256xf32> to vector<128x256xbf16>
    %cst_8 = arith.constant dense<0.000000e+00> : vector<16x128xf32>
    %30 = tpu.matmul %17, %29, %cst_8 {dimension_numbers = #tpu.dot_dimension_numbers<[1], [1], [0], [0], [0, 0, 1, 0], [], []>} : vector<16x256xbf16>, vector<128x256xbf16>, vector<16x128xf32> -> vector<16x128xf32>
    %31 = arith.truncf %30 : vector<16x128xf32> to vector<16x128xbf16>
    %32 = arith.index_cast %11 : i32 to index
    %c0_9 = arith.constant 0 : index
    %33 = vector.load %arg21[%32, %c0_9] : memref<64x128xbf16, #tpu.memory_space<vmem>>, vector<16x128xbf16>
    tpu.vector_store %arg21[%32, %c0_9], %31 {strides = array<i32>} : memref<64x128xbf16, #tpu.memory_space<vmem>>, vector<16x128xbf16>,
    %c3_i32 = arith.constant 3 : i32
    %34 = arith.cmpi eq, %arg3, %c3_i32 : i32
    %35 = arith.extui %34 : i1 to i32
    %c0_i32_10 = arith.constant 0 : i32
    %36 = arith.cmpi ne, %35, %c0_i32_10 : i32
    scf.if %36 {
      %c0_11 = arith.constant 0 : index
      %c0_12 = arith.constant 0 : index
      %37 = vector.load %arg14[%c0_11, %c0_12] : memref<64x64xbf16, #tpu.memory_space<vmem>>, vector<64x64xbf16>
      %c0_13 = arith.constant 0 : index
      %c0_14 = arith.constant 0 : index
      %38 = vector.load %arg21[%c0_13, %c0_14] : memref<64x128xbf16, #tpu.memory_space<vmem>>, vector<64x128xbf16>
      %cst_15 = arith.constant dense<0.000000e+00> : vector<64x128xf32>
      %39 = tpu.matmul %37, %38, %cst_15 {dimension_numbers = #tpu.dot_dimension_numbers<[0], [0], [1], [1], [0, 1, 1, 1], [], []>} : vector<64x64xbf16>, vector<64x128xbf16>, vector<64x128xf32> -> vector<64x128xf32>
      %c0_16 = arith.constant 0 : index
      %c0_17 = arith.constant 0 : index
      %40 = arith.index_cast %6 : i32 to index
      %41 = vector.load %arg4[%c0_16, %c0_17, %40] : memref<1x64x256xf32, #tpu.memory_space<vmem>>, vector<1x64x128xf32>
      %42 = vector.shape_cast %41 : vector<1x64x128xf32> to vector<64x128xf32>
      %43 = arith.addf %42, %39 : vector<64x128xf32>
      %c0_18 = arith.constant 0 : index
      %c0_19 = arith.constant 0 : index
      %44 = vector.load %arg15[%c0_18, %c0_19] : memref<64x1xf32, #tpu.memory_space<vmem>>, vector<64x1xf32>
      %45 = vector.broadcast %44 : vector<64x1xf32> to vector<64x128xf32>
      %46 = arith.addf %43, %45 : vector<64x128xf32>
      %c0_20 = arith.constant 0 : index
      %c0_21 = arith.constant 0 : index
      %c0_22 = arith.constant 0 : index
      %47 = vector.load %arg16[%c0_20, %c0_21, %c0_22] : memref<1x64x128xf32, #tpu.memory_space<vmem>>, vector<1x64x128xf32>
      %48 = vector.shape_cast %47 : vector<1x64x128xf32> to vector<64x128xf32>
      %49 = vector.shape_cast %46 : vector<64x128xf32> to vector<1x64x128xf32>
      tpu.vector_store %arg16[%c0_20, %c0_21, %c0_22], %49 {strides = array<i32>} : memref<1x64x128xf32, #tpu.memory_space<vmem>>, vector<1x64x128xf32>,
    } else {
    }
    return
  }
  func.func @transform_0(%arg0: i32, %arg1: i32, %arg2: i32, %arg3: i32) -> (i32, i32, i32) {
    %c0_i32 = arith.constant 0 : i32
    %c0_i32_0 = arith.constant 0 : i32
    return %arg0, %c0_i32, %arg1 : i32, i32, i32
  }
  func.func @transform_1(%arg0: i32, %arg1: i32, %arg2: i32, %arg3: i32) -> (i32, i32) {
    %c0_i32 = arith.constant 0 : i32
    %c0_i32_0 = arith.constant 0 : i32
    %c0_i32_1 = arith.constant 0 : i32
    return %c0_i32, %c0_i32_0 : i32, i32
  }
  func.func @transform_2(%arg0: i32, %arg1: i32, %arg2: i32, %arg3: i32) -> (i32, i32) {
    %c0_i32 = arith.constant 0 : i32
    %c0_i32_0 = arith.constant 0 : i32
    %c0_i32_1 = arith.constant 0 : i32
    return %c0_i32, %c0_i32_0 : i32, i32
  }
  func.func @transform_3(%arg0: i32, %arg1: i32, %arg2: i32, %arg3: i32) -> (i32, i32) {
    %c0_i32 = arith.constant 0 : i32
    %c0_i32_0 = arith.constant 0 : i32
    %c0_i32_1 = arith.constant 0 : i32
    return %c0_i32, %c0_i32_0 : i32, i32
  }
  func.func @transform_4(%arg0: i32, %arg1: i32, %arg2: i32, %arg3: i32) -> (i32, i32) {
    %c0_i32 = arith.constant 0 : i32
    %c0_i32_0 = arith.constant 0 : i32
    %c0_i32_1 = arith.constant 0 : i32
    return %c0_i32, %c0_i32_0 : i32, i32
  }
  func.func @transform_5(%arg0: i32, %arg1: i32, %arg2: i32, %arg3: i32) -> (i32, i32) {
    %c0_i32 = arith.constant 0 : i32
    %c0_i32_0 = arith.constant 0 : i32
    %c0_i32_1 = arith.constant 0 : i32
    return %c0_i32, %c0_i32_0 : i32, i32
  }
  func.func @transform_6(%arg0: i32, %arg1: i32, %arg2: i32, %arg3: i32) -> (i32, i32) {
    %c0_i32 = arith.constant 0 : i32
    %c0_i32_0 = arith.constant 0 : i32
    %c0_i32_1 = arith.constant 0 : i32
    return %c0_i32, %c0_i32_0 : i32, i32
  }
  func.func @transform_7(%arg0: i32, %arg1: i32, %arg2: i32, %arg3: i32) -> (i32, i32) {
    %c0_i32 = arith.constant 0 : i32
    %c0_i32_0 = arith.constant 0 : i32
    %c0_i32_1 = arith.constant 0 : i32
    return %c0_i32, %c0_i32_0 : i32, i32
  }
  func.func @transform_8(%arg0: i32, %arg1: i32, %arg2: i32, %arg3: i32) -> (i32, i32) {
    %c0_i32 = arith.constant 0 : i32
    %c0_i32_0 = arith.constant 0 : i32
    %c0_i32_1 = arith.constant 0 : i32
    return %c0_i32, %c0_i32_0 : i32, i32
  }
  func.func @transform_9(%arg0: i32, %arg1: i32, %arg2: i32, %arg3: i32) -> (i32, i32) {
    %c0_i32 = arith.constant 0 : i32
    %c0_i32_0 = arith.constant 0 : i32
    %c0_i32_1 = arith.constant 0 : i32
    return %c0_i32, %c0_i32_0 : i32, i32
  }
  func.func @transform_10(%arg0: i32, %arg1: i32, %arg2: i32, %arg3: i32) -> (i32, i32) {
    %c0_i32 = arith.constant 0 : i32
    %c0_i32_0 = arith.constant 0 : i32
    %c0_i32_1 = arith.constant 0 : i32
    return %c0_i32, %c0_i32_0 : i32, i32
  }
  func.func @transform_11(%arg0: i32, %arg1: i32, %arg2: i32, %arg3: i32) -> (i32, i32) {
    %c0_i32 = arith.constant 0 : i32
    %c0_i32_0 = arith.constant 0 : i32
    %c0_i32_1 = arith.constant 0 : i32
    return %c0_i32, %c0_i32_0 : i32, i32
  }
  func.func @transform_12(%arg0: i32, %arg1: i32, %arg2: i32, %arg3: i32) -> (i32, i32, i32) {
    %c2_i32 = arith.constant 2 : i32
    %0 = arith.muli %arg1, %c2_i32 : i32
    %1 = arith.addi %0, %arg2 : i32
    %c0_i32 = arith.constant 0 : i32
    %c0_i32_0 = arith.constant 0 : i32
    return %arg0, %c0_i32, %1 : i32, i32, i32
  }
}

</mosaic_0001>

<llo_original>
// kernel: tpu_custom_call.1
$region0: #{tpu_custom_call.1}
  #allocation0 [shape = 'u32[]', space=smem, size = 0x4, offset = 0x4, fixed_abs, tag = 'smem constant byte address 0x4 - core index']
  #allocation1 [shape = 'u32[144,128]{1,0:T(1,128)}', space=vmem, size = 0x12000, scoped, tag = 'internal scratch']
  #allocation2 [shape = 'bf16[64,256]{1,0:T(8,128)(2,1)}', space=vmem, size = 0x8000, scoped, tag = 'scratch operand']
  #allocation3 [shape = 'bf16[64,256]{1,0:T(8,128)(2,1)}', space=vmem, size = 0x8000, scoped, tag = 'scratch operand']
  #allocation4 [shape = 'bf16[64,256]{1,0:T(8,128)(2,1)}', space=vmem, size = 0x8000, scoped, tag = 'scratch operand']
  #allocation5 [shape = 'bf16[64,128]{1,0:T(8,128)(2,1)}', space=vmem, size = 0x4000, scoped, tag = 'scratch operand']
  #allocation6 [shape = 'bf16[64,128]{1,0:T(8,128)(2,1)}', space=vmem, size = 0x4000, scoped, tag = 'scratch operand']
  %s0 = inlined_call_operand.hbm [shape: f32[2,64,512], index: 0, kind: input, shape index: {}]
  %s1 = inlined_call_operand.vmem [shape: f32[64,64], index: 1, kind: input, shape index: {}]
  %s2 = inlined_call_operand.vmem [shape: bf16[64,64], index: 2, kind: input, shape index: {}]
  %s3 = inlined_call_operand.vmem [shape: f32[64,1], index: 3, kind: input, shape index: {}]
  %s4 = inlined_call_operand.vmem [shape: bf16[64,64], index: 4, kind: input, shape index: {}]
  %s5 = inlined_call_operand.vmem [shape: f32[64,1], index: 5, kind: input, shape index: {}]
  %s6 = inlined_call_operand.vmem [shape: bf16[64,64], index: 6, kind: input, shape index: {}]
  %s7 = inlined_call_operand.vmem [shape: f32[64,1], index: 7, kind: input, shape index: {}]
  %s8 = inlined_call_operand.vmem [shape: f32[64,1], index: 8, kind: input, shape index: {}]
  %s9 = inlined_call_operand.vmem [shape: f32[64,1], index: 9, kind: input, shape index: {}]
  %s10 = inlined_call_operand.vmem [shape: bf16[64,64], index: 10, kind: input, shape index: {}]
  %s11 = inlined_call_operand.vmem [shape: f32[64,1], index: 11, kind: input, shape index: {}]
  %s12 = inlined_call_operand.hbm [shape: f32[2,64,512], index: 12, kind: output, shape index: {}]
  %s13 = sld [smem:[#allocation0]]
  $region97: #{tpu_custom_call.1} parent=0
    _
  %s15 = ssub.s32 1, %s13
  %s16 = scalar_select 0, %s15, %s13
  $region1: #{tpu_custom_call.1} parent=0
    #allocation7 [shape = 'u8[131072]{0}', space=vmem, size = 0x20000, scoped, tag = 'input window, operand 0']
    #allocation8 [shape = 's32[2]{0}', space=sflag, size = 0x8, scoped, tag = 'scoped memory for tpu_custom_call.1']
    #allocation9 [shape = 's32[2]{0}', space=sflag, size = 0x8, scoped, tag = 'scoped memory for tpu_custom_call.1']
    #allocation10 [shape = 'u8[65536]{0}', space=vmem, size = 0x10000, scoped, tag = 'output window, operand 0']
    %17 = vsyncpa [#allocation8], 0
    %s18 = scalar_lea.sflag [#allocation8], 1
    %19 = vsyncpa %s18, 0
    %20 = vsyncpa [#allocation9], 0
    %s21 = scalar_lea.sflag [#allocation9], 1
    %22 = vsyncpa %s21, 0
    loop: start=0, step=1, limit=34
    $region2: #{tpu_custom_call.1} parent=1 // loop_pre_header
      _
    $region3: #{tpu_custom_call.1} parent=1 // loop_header
      %s24 = sphi 0, %s28
      %p25 = scmp.ge.s32.totalorder %s24, 34
      %s31 = sphi 0, %s57
      %s32 = sphi 0, %s53
      %s33 = sphi 0, %s49
      %s34 = sphi 0, %s45
      %s35 = sphi 0, %s31
      %s36 = sphi 0, %s32
      %s37 = sphi 0, %s33
      %s38 = sphi 0, %s34
      %s39 = sphi 0, %s35
      %s40 = sphi 0, %s36
      %s41 = sphi 0, %s37
      %s42 = sphi 0, %s38
      %s62 = sphi 0, %s64
      %s65 = sphi 0, %s62
      %s66 = sphi 0, %s65
      %s82 = sphi 0, %s66
      %s86 = sphi 0, %s86
      %s88 = sphi 0, %s86
      %s89 = sphi 0, %s88
      %s103 = sphi 0, %s89
      %s107 = sphi 0, %s107
      %s109 = sphi 0, %s107
      %s110 = sphi 0, %s109
      %s124 = sphi 0, %s110
      %s128 = sphi 0, %s128
      %s130 = sphi 0, %s128
      %s131 = sphi 0, %s130
      %s145 = sphi 0, %s131
      %s149 = sphi 0, %s149
      %s151 = sphi 0, %s149
      %s152 = sphi 0, %s151
      %s166 = sphi 0, %s152
      %s170 = sphi 0, %s170
      %s172 = sphi 0, %s170
      %s173 = sphi 0, %s172
      %s187 = sphi 0, %s173
      %s191 = sphi 0, %s191
      %s193 = sphi 0, %s191
      %s194 = sphi 0, %s193
      %s208 = sphi 0, %s194
      %s212 = sphi 0, %s212
      %s214 = sphi 0, %s212
      %s215 = sphi 0, %s214
      %s229 = sphi 0, %s215
      %s233 = sphi 0, %s233
      %s235 = sphi 0, %s233
      %s236 = sphi 0, %s235
      %s250 = sphi 0, %s236
      %s254 = sphi 0, %s254
      %s256 = sphi 0, %s254
      %s257 = sphi 0, %s256
      %s271 = sphi 0, %s257
      %s275 = sphi 0, %s275
      %s277 = sphi 0, %s275
      %s278 = sphi 0, %s277
      %s292 = sphi 0, %s278
      %s296 = sphi 0, %s296
      %s298 = sphi 0, %s296
      %s299 = sphi 0, %s298
      %s313 = sphi 0, %s299
      %s325 = sphi 0, %s327
      %s328 = sphi 0, %s325
      %s329 = sphi 0, %s328
      %s345 = sphi 0, %s329
    $region4: #{tpu_custom_call.1} parent=1 // loop_header_branch
      %27 = sbr.rel (%p25) target = $region8
    $region5: #{tpu_custom_call.1} parent=1 // loop_body
      %s29 = ssub.s32 %s24, 1
      %s30 = ssub.s32 %s24, 2
      %s43 = sadd.s32 1, %s34
      %p44 = scmp.ge.s32.totalorder %s43, 4
      %s45 = scalar_select %p44, 0, %s43
      %s46 = sadd.s32 1, %s33
      %s47 = scalar_select %p44, %s46, %s33
      %p48 = scmp.ge.s32.totalorder %s47, 2
      %s49 = scalar_select %p48, 0, %s47
      %s50 = sadd.s32 1, %s32
      %s51 = scalar_select %p48, %s50, %s32
      %p52 = scmp.ge.s32.totalorder %s51, 2
      %s53 = scalar_select %p52, 0, %s51
      %s54 = sadd.s32 1, %s31
      %s55 = scalar_select %p52, %s54, %s31
      %p56 = scmp.ge.s32.totalorder %s55, 2
      %s57 = scalar_select %p56, 0, %s55
      %s58 = ssub.s32 %s31, %s57
      %s59 = ssub.s32 %s32, %s53
      %s60 = sor.u32 %s58, %s59
      %p61 = scmp.eq.s32.totalorder %s60, 0
      %s63 = sadd.s32 %s62, 1
      %s64 = scalar_select %p61, %s62, %s63
      %p67 = pneg %p61
      %p68 = scmp.eq.s32.totalorder %s24, 31
      %p69 = por %p67, %p68
      %p70 = scmp.ne.s32.totalorder %s62, %s65
      %p71 = scmp.eq.s32.totalorder %s24, 0
      %p72 = por %p70, %p71
      %p73 = scmp.ne.s32.totalorder %s62, %s65
      %p74 = scmp.eq.s32.totalorder %s29, 31
      %p75 = por %p73, %p74
      %p76 = scmp.ne.s32.totalorder %s65, %s66
      %p77 = scmp.eq.s32.totalorder %s29, 0
      %p78 = por %p76, %p77
      %p79 = scmp.ne.s32.totalorder %s65, %s66
      %p80 = scmp.eq.s32.totalorder %s30, 31
      %p81 = por %p79, %p80
      %p83 = scmp.ne.s32.totalorder %s66, %s82
      %p84 = scmp.eq.s32.totalorder %s30, 0
      %p85 = por %p83, %p84
      %s87 = sadd.s32 %s86, 1
      %p90 = scmp.eq.s32.totalorder %s24, 31
      %p91 = scmp.ne.s32.totalorder %s86, %s88
      %p92 = scmp.eq.s32.totalorder %s24, 0
      %p93 = por %p91, %p92
      %p94 = scmp.ne.s32.totalorder %s86, %s88
      %p95 = scmp.eq.s32.totalorder %s29, 31
      %p96 = por %p94, %p95
      %p97 = scmp.ne.s32.totalorder %s88, %s89
      %p98 = scmp.eq.s32.totalorder %s29, 0
      %p99 = por %p97, %p98
      %p100 = scmp.ne.s32.totalorder %s88, %s89
      %p101 = scmp.eq.s32.totalorder %s30, 31
      %p102 = por %p100, %p101
      %p104 = scmp.ne.s32.totalorder %s89, %s103
      %p105 = scmp.eq.s32.totalorder %s30, 0
      %p106 = por %p104, %p105
      %s108 = sadd.s32 %s107, 1
      %p111 = scmp.eq.s32.totalorder %s24, 31
      %p112 = scmp.ne.s32.totalorder %s107, %s109
      %p113 = scmp.eq.s32.totalorder %s24, 0
      %p114 = por %p112, %p113
      %p115 = scmp.ne.s32.totalorder %s107, %s109
      %p116 = scmp.eq.s32.totalorder %s29, 31
      %p117 = por %p115, %p116
      %p118 = scmp.ne.s32.totalorder %s109, %s110
      %p119 = scmp.eq.s32.totalorder %s29, 0
      %p120 = por %p118, %p119
      %p121 = scmp.ne.s32.totalorder %s109, %s110
      %p122 = scmp.eq.s32.totalorder %s30, 31
      %p123 = por %p121, %p122
      %p125 = scmp.ne.s32.totalorder %s110, %s124
      %p126 = scmp.eq.s32.totalorder %s30, 0
      %p127 = por %p125, %p126
      %s129 = sadd.s32 %s128, 1
      %p132 = scmp.eq.s32.totalorder %s24, 31
      %p133 = scmp.ne.s32.totalorder %s128, %s130
      %p134 = scmp.eq.s32.totalorder %s24, 0
      %p135 = por %p133, %p134
      %p136 = scmp.ne.s32.totalorder %s128, %s130
      %p137 = scmp.eq.s32.totalorder %s29, 31
      %p138 = por %p136, %p137
      %p139 = scmp.ne.s32.totalorder %s130, %s131
      %p140 = scmp.eq.s32.totalorder %s29, 0
      %p141 = por %p139, %p140
      %p142 = scmp.ne.s32.totalorder %s130, %s131
      %p143 = scmp.eq.s32.totalorder %s30, 31
      %p144 = por %p142, %p143
      %p146 = scmp.ne.s32.totalorder %s131, %s145
      %p147 = scmp.eq.s32.totalorder %s30, 0
      %p148 = por %p146, %p147
      %s150 = sadd.s32 %s149, 1
      %p153 = scmp.eq.s32.totalorder %s24, 31
      %p154 = scmp.ne.s32.totalorder %s149, %s151
      %p155 = scmp.eq.s32.totalorder %s24, 0
      %p156 = por %p154, %p155
      %p157 = scmp.ne.s32.totalorder %s149, %s151
      %p158 = scmp.eq.s32.totalorder %s29, 31
      %p159 = por %p157, %p158
      %p160 = scmp.ne.s32.totalorder %s151, %s152
      %p161 = scmp.eq.s32.totalorder %s29, 0
      %p162 = por %p160, %p161
      %p163 = scmp.ne.s32.totalorder %s151, %s152
      %p164 = scmp.eq.s32.totalorder %s30, 31
      %p165 = por %p163, %p164
      %p167 = scmp.ne.s32.totalorder %s152, %s166
      %p168 = scmp.eq.s32.totalorder %s30, 0
      %p169 = por %p167, %p168
      %s171 = sadd.s32 %s170, 1
      %p174 = scmp.eq.s32.totalorder %s24, 31
      %p175 = scmp.ne.s32.totalorder %s170, %s172
      %p176 = scmp.eq.s32.totalorder %s24, 0
      %p177 = por %p175, %p176
      %p178 = scmp.ne.s32.totalorder %s170, %s172
      %p179 = scmp.eq.s32.totalorder %s29, 31
      %p180 = por %p178, %p179
      %p181 = scmp.ne.s32.totalorder %s172, %s173
      %p182 = scmp.eq.s32.totalorder %s29, 0
      %p183 = por %p181, %p182
      %p184 = scmp.ne.s32.totalorder %s172, %s173
      %p185 = scmp.eq.s32.totalorder %s30, 31
      %p186 = por %p184, %p185
      %p188 = scmp.ne.s32.totalorder %s173, %s187
      %p189 = scmp.eq.s32.totalorder %s30, 0
      %p190 = por %p188, %p189
      %s192 = sadd.s32 %s191, 1
      %p195 = scmp.eq.s32.totalorder %s24, 31
      %p196 = scmp.ne.s32.totalorder %s191, %s193
      %p197 = scmp.eq.s32.totalorder %s24, 0
      %p198 = por %p196, %p197
      %p199 = scmp.ne.s32.totalorder %s191, %s193
      %p200 = scmp.eq.s32.totalorder %s29, 31
      %p201 = por %p199, %p200
      %p202 = scmp.ne.s32.totalorder %s193, %s194
      %p203 = scmp.eq.s32.totalorder %s29, 0
      %p204 = por %p202, %p203
      %p205 = scmp.ne.s32.totalorder %s193, %s194
      %p206 = scmp.eq.s32.totalorder %s30, 31
      %p207 = por %p205, %p206
      %p209 = scmp.ne.s32.totalorder %s194, %s208
      %p210 = scmp.eq.s32.totalorder %s30, 0
      %p211 = por %p209, %p210
      %s213 = sadd.s32 %s212, 1
      %p216 = scmp.eq.s32.totalorder %s24, 31
      %p217 = scmp.ne.s32.totalorder %s212, %s214
      %p218 = scmp.eq.s32.totalorder %s24, 0
      %p219 = por %p217, %p218
      %p220 = scmp.ne.s32.totalorder %s212, %s214
      %p221 = scmp.eq.s32.totalorder %s29, 31
      %p222 = por %p220, %p221
      %p223 = scmp.ne.s32.totalorder %s214, %s215
      %p224 = scmp.eq.s32.totalorder %s29, 0
      %p225 = por %p223, %p224
      %p226 = scmp.ne.s32.totalorder %s214, %s215
      %p227 = scmp.eq.s32.totalorder %s30, 31
      %p228 = por %p226, %p227
      %p230 = scmp.ne.s32.totalorder %s215, %s229
      %p231 = scmp.eq.s32.totalorder %s30, 0
      %p232 = por %p230, %p231
      %s234 = sadd.s32 %s233, 1
      %p237 = scmp.eq.s32.totalorder %s24, 31
      %p238 = scmp.ne.s32.totalorder %s233, %s235
      %p239 = scmp.eq.s32.totalorder %s24, 0
      %p240 = por %p238, %p239
      %p241 = scmp.ne.s32.totalorder %s233, %s235
      %p242 = scmp.eq.s32.totalorder %s29, 31
      %p243 = por %p241, %p242
      %p244 = scmp.ne.s32.totalorder %s235, %s236
      %p245 = scmp.eq.s32.totalorder %s29, 0
      %p246 = por %p244, %p245
      %p247 = scmp.ne.s32.totalorder %s235, %s236
      %p248 = scmp.eq.s32.totalorder %s30, 31
      %p249 = por %p247, %p248
      %p251 = scmp.ne.s32.totalorder %s236, %s250
      %p252 = scmp.eq.s32.totalorder %s30, 0
      %p253 = por %p251, %p252
      %s255 = sadd.s32 %s254, 1
      %p258 = scmp.eq.s32.totalorder %s24, 31
      %p259 = scmp.ne.s32.totalorder %s254, %s256
      %p260 = scmp.eq.s32.totalorder %s24, 0
      %p261 = por %p259, %p260
      %p262 = scmp.ne.s32.totalorder %s254, %s256
      %p263 = scmp.eq.s32.totalorder %s29, 31
      %p264 = por %p262, %p263
      %p265 = scmp.ne.s32.totalorder %s256, %s257
      %p266 = scmp.eq.s32.totalorder %s29, 0
      %p267 = por %p265, %p266
      %p268 = scmp.ne.s32.totalorder %s256, %s257
      %p269 = scmp.eq.s32.totalorder %s30, 31
      %p270 = por %p268, %p269
      %p272 = scmp.ne.s32.totalorder %s257, %s271
      %p273 = scmp.eq.s32.totalorder %s30, 0
      %p274 = por %p272, %p273
      %s276 = sadd.s32 %s275, 1
      %p279 = scmp.eq.s32.totalorder %s24, 31
      %p280 = scmp.ne.s32.totalorder %s275, %s277
      %p281 = scmp.eq.s32.totalorder %s24, 0
      %p282 = por %p280, %p281
      %p283 = scmp.ne.s32.totalorder %s275, %s277
      %p284 = scmp.eq.s32.totalorder %s29, 31
      %p285 = por %p283, %p284
      %p286 = scmp.ne.s32.totalorder %s277, %s278
      %p287 = scmp.eq.s32.totalorder %s29, 0
      %p288 = por %p286, %p287
      %p289 = scmp.ne.s32.totalorder %s277, %s278
      %p290 = scmp.eq.s32.totalorder %s30, 31
      %p291 = por %p289, %p290
      %p293 = scmp.ne.s32.totalorder %s278, %s292
      %p294 = scmp.eq.s32.totalorder %s30, 0
      %p295 = por %p293, %p294
      %s297 = sadd.s32 %s296, 1
      %p300 = scmp.eq.s32.totalorder %s24, 31
      %p301 = scmp.ne.s32.totalorder %s296, %s298
      %p302 = scmp.eq.s32.totalorder %s24, 0
      %p303 = por %p301, %p302
      %p304 = scmp.ne.s32.totalorder %s296, %s298
      %p305 = scmp.eq.s32.totalorder %s29, 31
      %p306 = por %p304, %p305
      %p307 = scmp.ne.s32.totalorder %s298, %s299
      %p308 = scmp.eq.s32.totalorder %s29, 0
      %p309 = por %p307, %p308
      %p310 = scmp.ne.s32.totalorder %s298, %s299
      %p311 = scmp.eq.s32.totalorder %s30, 31
      %p312 = por %p310, %p311
      %p314 = scmp.ne.s32.totalorder %s299, %s313
      %p315 = scmp.eq.s32.totalorder %s30, 0
      %p316 = por %p314, %p315
      %s317 = smul.u32 %s32, 2
      %s318 = sadd.s32 %s317, %s33
      %s319 = smul.u32 %s53, 2
      %s320 = sadd.s32 %s319, %s49
      %s321 = ssub.s32 %s31, %s57
      %s322 = ssub.s32 %s318, %s320
      %s323 = sor.u32 %s321, %s322
      %p324 = scmp.eq.s32.totalorder %s323, 0
      %s326 = sadd.s32 %s325, 1
      %s327 = scalar_select %p324, %s325, %s326
      %p330 = pneg %p324
      %p331 = scmp.eq.s32.totalorder %s24, 31
      %p332 = por %p330, %p331
      %p333 = scmp.ne.s32.totalorder %s325, %s328
      %p334 = scmp.eq.s32.totalorder %s24, 0
      %p335 = por %p333, %p334
      %p336 = scmp.ne.s32.totalorder %s325, %s328
      %p337 = scmp.eq.s32.totalorder %s29, 31
      %p338 = por %p336, %p337
      %p339 = scmp.ne.s32.totalorder %s328, %s329
      %p340 = scmp.eq.s32.totalorder %s29, 0
      %p341 = por %p339, %p340
      %p342 = scmp.ne.s32.totalorder %s328, %s329
      %p343 = scmp.eq.s32.totalorder %s30, 31
      %p344 = por %p342, %p343
      %p346 = scmp.ne.s32.totalorder %s329, %s345
      %p347 = scmp.eq.s32.totalorder %s30, 0
      %p348 = por %p346, %p347
      %p349 = scmp.le.s32.totalorder 1, %s24
      %p350 = scmp.lt.s32.totalorder %s24, 33
      %p351 = pnand %p349, %p350
      %p352 = pneg %p351
      // Predicated region
      $region9: #{tpu_custom_call.1} parent=5 // pred_check
        _
      $region10: #{tpu_custom_call.1} parent=5 // pred_check_branch
        %354 = sbr.rel (%p351) target = $region12
      $region11: #{tpu_custom_call.1} parent=5 // pred_region
        %s355 = ssub.s32 %s24, 1
        // Predicated region
        $region13: #{tpu_custom_call.1} parent=11 // pred_check
          %p356 = pneg %p99
        $region14: #{tpu_custom_call.1} parent=11 // pred_check_branch
          %358 = sbr.rel (%p356) target = $region16
        $region15: #{tpu_custom_call.1} parent=11 // pred_region
          _
        $region16: #{tpu_custom_call.1} parent=11 // pred_fallthru
          _
        // Predicated region
        $region17: #{tpu_custom_call.1} parent=11 // pred_check
          %p359 = pneg %p120
        $region18: #{tpu_custom_call.1} parent=11 // pred_check_branch
          %361 = sbr.rel (%p359) target = $region20
        $region19: #{tpu_custom_call.1} parent=11 // pred_region
          _
        $region20: #{tpu_custom_call.1} parent=11 // pred_fallthru
          _
        // Predicated region
        $region21: #{tpu_custom_call.1} parent=11 // pred_check
          %p362 = pneg %p141
        $region22: #{tpu_custom_call.1} parent=11 // pred_check_branch
          %364 = sbr.rel (%p362) target = $region24
        $region23: #{tpu_custom_call.1} parent=11 // pred_region
          _
        $region24: #{tpu_custom_call.1} parent=11 // pred_fallthru
          _
        // Predicated region
        $region25: #{tpu_custom_call.1} parent=11 // pred_check
          %p365 = pneg %p162
        $region26: #{tpu_custom_call.1} parent=11 // pred_check_branch
          %367 = sbr.rel (%p365) target = $region28
        $region27: #{tpu_custom_call.1} parent=11 // pred_region
          _
        $region28: #{tpu_custom_call.1} parent=11 // pred_fallthru
          _
        // Predicated region
        $region29: #{tpu_custom_call.1} parent=11 // pred_check
          %p368 = pneg %p183
        $region30: #{tpu_custom_call.1} parent=11 // pred_check_branch
          %370 = sbr.rel (%p368) target = $region32
        $region31: #{tpu_custom_call.1} parent=11 // pred_region
          _
        $region32: #{tpu_custom_call.1} parent=11 // pred_fallthru
          _
        // Predicated region
        $region33: #{tpu_custom_call.1} parent=11 // pred_check
          %p371 = pneg %p204
        $region34: #{tpu_custom_call.1} parent=11 // pred_check_branch
          %373 = sbr.rel (%p371) target = $region36
        $region35: #{tpu_custom_call.1} parent=11 // pred_region
          _
        $region36: #{tpu_custom_call.1} parent=11 // pred_fallthru
          _
        // Predicated region
        $region37: #{tpu_custom_call.1} parent=11 // pred_check
          %p374 = pneg %p225
        $region38: #{tpu_custom_call.1} parent=11 // pred_check_branch
          %376 = sbr.rel (%p374) target = $region40
        $region39: #{tpu_custom_call.1} parent=11 // pred_region
          _
        $region40: #{tpu_custom_call.1} parent=11 // pred_fallthru
          _
        // Predicated region
        $region41: #{tpu_custom_call.1} parent=11 // pred_check
          %p377 = pneg %p246
        $region42: #{tpu_custom_call.1} parent=11 // pred_check_branch
          %379 = sbr.rel (%p377) target = $region44
        $region43: #{tpu_custom_call.1} parent=11 // pred_region
          _
        $region44: #{tpu_custom_call.1} parent=11 // pred_fallthru
          _
        // Predicated region
        $region45: #{tpu_custom_call.1} parent=11 // pred_check
          %p380 = pneg %p267
        $region46: #{tpu_custom_call.1} parent=11 // pred_check_branch
          %382 = sbr.rel (%p380) target = $region48
        $region47: #{tpu_custom_call.1} parent=11 // pred_region
          _
        $region48: #{tpu_custom_call.1} parent=11 // pred_fallthru
          _
        // Predicated region
        $region49: #{tpu_custom_call.1} parent=11 // pred_check
          %p383 = pneg %p288
        $region50: #{tpu_custom_call.1} parent=11 // pred_check_branch
          %385 = sbr.rel (%p383) target = $region52
        $region51: #{tpu_custom_call.1} parent=11 // pred_region
          _
        $region52: #{tpu_custom_call.1} parent=11 // pred_fallthru
          _
        // Predicated region
        $region53: #{tpu_custom_call.1} parent=11 // pred_check
          %p386 = pneg %p309
        $region54: #{tpu_custom_call.1} parent=11 // pred_check_branch
          %388 = sbr.rel (%p386) target = $region56
        $region55: #{tpu_custom_call.1} parent=11 // pred_region
          _
        $region56: #{tpu_custom_call.1} parent=11 // pred_fallthru
          _
      $region12: #{tpu_custom_call.1} parent=5 // pred_fallthru
        _
      %p389 = scmp.lt.s32.totalorder %s24, 32
      // Predicated region
      $region57: #{tpu_custom_call.1} parent=5 // pred_check
        %p390 = pneg %p389
      $region58: #{tpu_custom_call.1} parent=5 // pred_check_branch
        %392 = sbr.rel (%p390) target = $region60
      $region59: #{tpu_custom_call.1} parent=5 // pred_region
        // Predicated region
        $region61: #{tpu_custom_call.1} parent=59 // pred_check
          %p393 = pneg %p72
        $region62: #{tpu_custom_call.1} parent=59 // pred_check_branch
          %395 = sbr.rel (%p393) target = $region64
        $region63: #{tpu_custom_call.1} parent=59 // pred_region
          %s396 = sand.u32 %s62, 1
          %s397 = scalar_lea.sflag [#allocation8], %s396
          %s398 = sand.u32 %s62, 1
          %s399 = smul.addr %s398, 128
          %s400 = scalar_lea.vmem [#allocation7], %s399
          %s401 = smul.u32 2, %s32
          %s403 = ssub.s32 2048, 2048
          %404 = vsyncadd %s397, %s403
          %s405 = smul.addr %s31, 32
          %s406 = sadd.s32 %s401, %s405
          %s407 = smul.addr %s406, 128
          %s408 = scalar_lea.hbm %s0, %s407
          %s409 = sshll.u32 %s400, 4
          %s410 = int_to_ptr.vmem [resolvable:$true] %s409
          %415 = dma.hbm_to_vmem [thread:$0]  %s408, 2048, %s410, %s397, 512, 256, 16
        $region64: #{tpu_custom_call.1} parent=59 // pred_fallthru
          _
      $region60: #{tpu_custom_call.1} parent=5 // pred_fallthru
        _
      %p416 = scmp.le.s32.totalorder 1, %s24
      %p417 = scmp.lt.s32.totalorder %s24, 33
      %p418 = pnand %p416, %p417
      %p419 = pneg %p418
      // Predicated region
      $region65: #{tpu_custom_call.1} parent=5 // pred_check
        _
      $region66: #{tpu_custom_call.1} parent=5 // pred_check_branch
        %421 = sbr.rel (%p418) target = $region68
      $region67: #{tpu_custom_call.1} parent=5 // pred_region
        %s422 = ssub.s32 %s24, 1
        %s423 = sand.u32 %s65, 1
        %s424 = scalar_lea.sflag [#allocation8], %s423
        %s425 = sand.u32 %s65, 1
        %s426 = smul.addr %s425, 128
        %s427 = scalar_lea.vmem [#allocation7], %s426
        // Predicated region
        $region69: #{tpu_custom_call.1} parent=67 // pred_check
          %p428 = pneg %p78
        $region70: #{tpu_custom_call.1} parent=67 // pred_check_branch
          %430 = sbr.rel (%p428) target = $region72
        $region71: #{tpu_custom_call.1} parent=67 // pred_region
          %431 = dma.done %s424, 2048
        $region72: #{tpu_custom_call.1} parent=67 // pred_fallthru
          _
        %s432 = sand.u32 %s65, 1
        %s433 = scalar_lea.sflag [#allocation8], %s432
        %s434 = sand.u32 %s65, 1
        %s435 = smul.addr %s434, 128
        %s436 = scalar_lea.vmem [#allocation7], %s435
        %p437 = pneg %p78
        %p438 = pneg %p75
        %p439 = pneg %p99
        %p440 = pneg %p96
        %p441 = pneg %p120
        %p442 = pneg %p117
        %p443 = pneg %p141
        %p444 = pneg %p138
        %p445 = pneg %p162
        %p446 = pneg %p159
        %p447 = pneg %p183
        %p448 = pneg %p180
        %p449 = pneg %p204
        %p450 = pneg %p201
        %p451 = pneg %p225
        %p452 = pneg %p222
        %p453 = pneg %p246
        %p454 = pneg %p243
        %p455 = pneg %p267
        %p456 = pneg %p264
        %p457 = pneg %p288
        %p458 = pneg %p285
        %p459 = pneg %p309
        %p460 = pneg %p306
        %p461 = pneg %p341
        %p462 = pneg %p338
        %s463 = sand.u32 %s328, 1
        %s464 = scalar_lea.sflag [#allocation9], %s463
        %s465 = sand.u32 %s328, 1
        %s466 = smul.addr %s465, 64
        %s467 = scalar_lea.vmem [#allocation10], %s466
        %s468 = smul.u32 2, %s36
        %s469 = smul.u32 %s36, 2
        %s470 = sadd.s32 %s469, %s37
        %p472 = scmp.eq.s32.totalorder %s37, 0
        %p473 = scmp.eq.s32.totalorder %s38, 0
        %p474 = pnand %p472, %p473
        %p475 = pneg %p474
        // Predicated region
        $region73: #{tpu_custom_call.1} parent=67 // pred_check
          _
        $region74: #{tpu_custom_call.1} parent=67 // pred_check_branch
          %477 = sbr.rel (%p474) target = $region76
        $region75: #{tpu_custom_call.1} parent=67 // pred_region
          %v478 = vld [vmem:[%s427] sm:$0xff]
          %v479 = vld [vmem:[%s427 + $0x8] sm:$0xff]
          %v480 = vld [vmem:[%s427 + $0x10] sm:$0xff]
          %v481 = vld [vmem:[%s427 + $0x18] sm:$0xff]
          %v482 = vld [vmem:[%s427 + $0x20] sm:$0xff]
          %v483 = vld [vmem:[%s427 + $0x28] sm:$0xff]
          %v484 = vld [vmem:[%s427 + $0x30] sm:$0xff]
          %v485 = vld [vmem:[%s427 + $0x38] sm:$0xff]
          %v486 = vld [vmem:[%s427 + $0x40] sm:$0xff]
          %v487 = vld [vmem:[%s427 + $0x48] sm:$0xff]
          %v488 = vld [vmem:[%s427 + $0x50] sm:$0xff]
          %v489 = vld [vmem:[%s427 + $0x58] sm:$0xff]
          %v490 = vld [vmem:[%s427 + $0x60] sm:$0xff]
          %v491 = vld [vmem:[%s427 + $0x68] sm:$0xff]
          %v492 = vld [vmem:[%s427 + $0x70] sm:$0xff]
          %v493 = vld [vmem:[%s427 + $0x78] sm:$0xff]
          %v494 = vadd.f32 %v478, %v479
          %495 = vadd.xlane.f32.xlu0 %v494
          %v496 = vpop.xlane.xlu0 %495
          %v497 = vadd.f32 %v480, %v481
          %498 = vadd.xlane.f32.xlu0 %v497
          %v499 = vpop.xlane.xlu0 %498
          %v500 = vadd.f32 %v482, %v483
          %501 = vadd.xlane.f32.xlu0 %v500
          %v502 = vpop.xlane.xlu0 %501
          %v503 = vadd.f32 %v484, %v485
          %504 = vadd.xlane.f32.xlu0 %v503
          %v505 = vpop.xlane.xlu0 %504
          %v506 = vadd.f32 %v486, %v487
          %507 = vadd.xlane.f32.xlu0 %v506
          %v508 = vpop.xlane.xlu0 %507
          %v509 = vadd.f32 %v488, %v489
          %510 = vadd.xlane.f32.xlu0 %v509
          %v511 = vpop.xlane.xlu0 %510
          %v512 = vadd.f32 %v490, %v491
          %513 = vadd.xlane.f32.xlu0 %v512
          %v514 = vpop.xlane.xlu0 %513
          %v515 = vadd.f32 %v492, %v493
          %516 = vadd.xlane.f32.xlu0 %v515
          %v517 = vpop.xlane.xlu0 %516
          %v518 = vld [vmem:[%s1] sm:$0xff]
          %v519 = vld [vmem:[%s1 + $0x8] sm:$0xff]
          %v520 = vld [vmem:[%s1 + $0x10] sm:$0xff]
          %v521 = vld [vmem:[%s1 + $0x18] sm:$0xff]
          %v522 = vld [vmem:[%s1 + $0x20] sm:$0xff]
          %v523 = vld [vmem:[%s1 + $0x28] sm:$0xff]
          %v524 = vld [vmem:[%s1 + $0x30] sm:$0xff]
          %v525 = vld [vmem:[%s1 + $0x38] sm:$0xff]
          %vm526 = vcmask 523264
          %v528 = vsel %vm526, %v518, 0
          %v531 = vsel %vm526, %v519, 0
          %v534 = vsel %vm526, %v520, 0
          %v537 = vsel %vm526, %v521, 0
          %v540 = vsel %vm526, %v522, 0
          %v543 = vsel %vm526, %v523, 0
          %v546 = vsel %vm526, %v524, 0
          %v549 = vsel %vm526, %v525, 0
          %551 = vmatprep.subr.mxu0 0.0
          %552 = vmatpush1.msra.mxu0 0.0
          %553 = vmatprep.subr.mxu0 0.0
          %554 = vmatpush1.msra.mxu0 0.0
          %555 = vmatprep.subr.mxu0 0.0
          %556 = vmatpush1.msra.mxu0 0.0
          %557 = vmatprep.subr.mxu0 0.0
          %558 = vmatpush1.msra.mxu0 0.0
          %559 = vmatprep.subr.mxu0 0.0
          %560 = vmatpush1.msra.mxu0 0.0
          %561 = vmatprep.subr.mxu0 0.0
          %562 = vmatpush1.msra.mxu0 0.0
          %563 = vmatprep.subr.mxu0 0.0
          %564 = vmatpush1.msra.mxu0 0.0
          %565 = vmatprep.subr.mxu0 0.0
          %566 = vmatpush1.msra.mxu0 0.0
          %567 = vmatprep.subr.mxu0 0.0
          %568 = vmatpush1.msra.mxu0 %v517
          %569 = vmatprep.subr.mxu0 0.0
          %570 = vmatpush1.msra.mxu0 %v514
          %571 = vmatprep.subr.mxu0 0.0
          %572 = vmatpush1.msra.mxu0 %v511
          %573 = vmatprep.subr.mxu0 0.0
          %574 = vmatpush1.msra.mxu0 %v508
          %575 = vmatprep.subr.mxu0 0.0
          %576 = vmatpush1.msra.mxu0 %v505
          %577 = vmatprep.subr.mxu0 0.0
          %578 = vmatpush1.msra.mxu0 %v502
          %579 = vmatprep.subr.mxu0 0.0
          %580 = vmatpush1.msra.mxu0 %v499
          %581 = vmatprep.subr.mxu0 0.0
          %582 = vmatpush1.msra.mxu0 %v496
          %583 = vmatprep.subr.mxu0 0.0
          %584 = vmatpush2.msra.mxu0 0.0
          %585 = vmatprep.subr.mxu0 0.0
          %586 = vmatpush2.msra.mxu0 0.0
          %587 = vmatprep.subr.mxu0 0.0
          %588 = vmatpush2.msra.mxu0 0.0
          %589 = vmatprep.subr.mxu0 0.0
          %590 = vmatpush2.msra.mxu0 0.0
          %591 = vmatprep.subr.mxu0 0.0
          %592 = vmatpush2.msra.mxu0 0.0
          %593 = vmatprep.subr.mxu0 0.0
          %594 = vmatpush2.msra.mxu0 0.0
          %595 = vmatprep.subr.mxu0 0.0
          %596 = vmatpush2.msra.mxu0 0.0
          %597 = vmatprep.subr.mxu0 0.0
          %598 = vmatpush2.msra.mxu0 0.0
          %599 = vmatprep.subr.mxu0 0.0
          %600 = vmatpush2.msra.mxu0 0.0
          %601 = vmatprep.subr.mxu0 0.0
          %602 = vmatpush2.msra.mxu0 0.0
          %603 = vmatprep.subr.mxu0 0.0
          %604 = vmatpush2.msra.mxu0 0.0
          %605 = vmatprep.subr.mxu0 0.0
          %606 = vmatpush2.msra.mxu0 0.0
          %607 = vmatprep.subr.mxu0 0.0
          %608 = vmatpush2.msra.mxu0 0.0
          %609 = vmatprep.subr.mxu0 0.0
          %610 = vmatpush2.msra.mxu0 0.0
          %611 = vmatprep.subr.mxu0 0.0
          %612 = vmatpush2.msra.mxu0 0.0
          %613 = vmatprep.subr.mxu0 0.0
          %614 = vmatpush2.msra.mxu0 0.0
          %615 = vmatprep.mubr.f32.mxu0 0.0
          %616 = vmatmul.mubr.f32.gmra.mxu0 %v528
          %v617 = vpop.f32.mrf.mxu0
          %v618 = vadd.f32 0.0, %v617
          %v619 = vpop.f32.mrf.mxu0
          %620 = vmatprep.mubr.f32.mxu0 0.0
          %621 = vmatmul.mubr.f32.gmra.mxu0 %v531
          %v622 = vpop.f32.mrf.mxu0
          %v623 = vadd.f32 0.0, %v622
          %v624 = vpop.f32.mrf.mxu0
          %625 = vmatprep.mubr.f32.mxu0 0.0
          %626 = vmatmul.mubr.f32.gmra.mxu0 %v534
          %v627 = vpop.f32.mrf.mxu0
          %v628 = vadd.f32 0.0, %v627
          %v629 = vpop.f32.mrf.mxu0
          %630 = vmatprep.mubr.f32.mxu0 0.0
          %631 = vmatmul.mubr.f32.gmra.mxu0 %v537
          %v632 = vpop.f32.mrf.mxu0
          %v633 = vadd.f32 0.0, %v632
          %v634 = vpop.f32.mrf.mxu0
          %635 = vmatprep.mubr.f32.mxu0 0.0
          %636 = vmatmul.mubr.f32.gmra.mxu0 %v540
          %v637 = vpop.f32.mrf.mxu0
          %v638 = vadd.f32 0.0, %v637
          %v639 = vpop.f32.mrf.mxu0
          %640 = vmatprep.mubr.f32.mxu0 0.0
          %641 = vmatmul.mubr.f32.gmra.mxu0 %v543
          %v642 = vpop.f32.mrf.mxu0
          %v643 = vadd.f32 0.0, %v642
          %v644 = vpop.f32.mrf.mxu0
          %645 = vmatprep.mubr.f32.mxu0 0.0
          %646 = vmatmul.mubr.f32.gmra.mxu0 %v546
          %v647 = vpop.f32.mrf.mxu0
          %v648 = vadd.f32 0.0, %v647
          %v649 = vpop.f32.mrf.mxu0
          %650 = vmatprep.mubr.f32.mxu0 0.0
          %651 = vmatmul.mubr.f32.gmra.mxu0 %v549
          %v652 = vpop.f32.mrf.mxu0
          %v653 = vadd.f32 0.0, %v652
          %v654 = vpop.f32.mrf.mxu0
          %655 = vdwg.mxu0
          %657 = vset.pattern.permute.xlu0 0
          %658 = vperm.xlu0 %657, %v618
          %v659 = vpop.permute.xlu0 %658
          %662 = vset.pattern.permute.xlu0 0
          %663 = vperm.xlu0 %662, %v623
          %v664 = vpop.permute.xlu0 %663
          %667 = vset.pattern.permute.xlu0 0
          %668 = vperm.xlu0 %667, %v628
          %v669 = vpop.permute.xlu0 %668
          %672 = vset.pattern.permute.xlu0 0
          %673 = vperm.xlu0 %672, %v633
          %v674 = vpop.permute.xlu0 %673
          %677 = vset.pattern.permute.xlu0 0
          %678 = vperm.xlu0 %677, %v638
          %v679 = vpop.permute.xlu0 %678
          %682 = vset.pattern.permute.xlu0 0
          %683 = vperm.xlu0 %682, %v643
          %v684 = vpop.permute.xlu0 %683
          %687 = vset.pattern.permute.xlu0 0
          %688 = vperm.xlu0 %687, %v648
          %v689 = vpop.permute.xlu0 %688
          %692 = vset.pattern.permute.xlu0 0
          %693 = vperm.xlu0 %692, %v653
          %v694 = vpop.permute.xlu0 %693
          %v696 = vsub.f32 %v478, %v659
          %v697 = vsub.f32 %v479, %v659
          %v698 = vsub.f32 %v480, %v664
          %v699 = vsub.f32 %v481, %v664
          %v700 = vsub.f32 %v482, %v669
          %v701 = vsub.f32 %v483, %v669
          %v702 = vsub.f32 %v484, %v674
          %v703 = vsub.f32 %v485, %v674
          %v704 = vsub.f32 %v486, %v679
          %v705 = vsub.f32 %v487, %v679
          %v706 = vsub.f32 %v488, %v684
          %v707 = vsub.f32 %v489, %v684
          %v708 = vsub.f32 %v490, %v689
          %v709 = vsub.f32 %v491, %v689
          %v710 = vsub.f32 %v492, %v694
          %v711 = vsub.f32 %v493, %v694
          %v712 = vmul.f32 %v696, %v696
          %v713 = vmul.f32 %v697, %v697
          %v714 = vmul.f32 %v698, %v698
          %v715 = vmul.f32 %v699, %v699
          %v716 = vmul.f32 %v700, %v700
          %v717 = vmul.f32 %v701, %v701
          %v718 = vmul.f32 %v702, %v702
          %v719 = vmul.f32 %v703, %v703
          %v720 = vmul.f32 %v704, %v704
          %v721 = vmul.f32 %v705, %v705
          %v722 = vmul.f32 %v706, %v706
          %v723 = vmul.f32 %v707, %v707
          %v724 = vmul.f32 %v708, %v708
          %v725 = vmul.f32 %v709, %v709
          %v726 = vmul.f32 %v710, %v710
          %v727 = vmul.f32 %v711, %v711
          %v728 = vadd.f32 %v712, %v713
          %729 = vadd.xlane.f32.xlu0 %v728
          %v730 = vpop.xlane.xlu0 %729
          %v731 = vadd.f32 %v714, %v715
          %732 = vadd.xlane.f32.xlu0 %v731
          %v733 = vpop.xlane.xlu0 %732
          %v734 = vadd.f32 %v716, %v717
          %735 = vadd.xlane.f32.xlu0 %v734
          %v736 = vpop.xlane.xlu0 %735
          %v737 = vadd.f32 %v718, %v719
          %738 = vadd.xlane.f32.xlu0 %v737
          %v739 = vpop.xlane.xlu0 %738
          %v740 = vadd.f32 %v720, %v721
          %741 = vadd.xlane.f32.xlu0 %v740
          %v742 = vpop.xlane.xlu0 %741
          %v743 = vadd.f32 %v722, %v723
          %744 = vadd.xlane.f32.xlu0 %v743
          %v745 = vpop.xlane.xlu0 %744
          %v746 = vadd.f32 %v724, %v725
          %747 = vadd.xlane.f32.xlu0 %v746
          %v748 = vpop.xlane.xlu0 %747
          %v749 = vadd.f32 %v726, %v727
          %750 = vadd.xlane.f32.xlu0 %v749
          %v751 = vpop.xlane.xlu0 %750
          %752 = vmatprep.subr.mxu0 0.0
          %753 = vmatpush1.msra.mxu0 0.0
          %754 = vmatprep.subr.mxu0 0.0
          %755 = vmatpush1.msra.mxu0 0.0
          %756 = vmatprep.subr.mxu0 0.0
          %757 = vmatpush1.msra.mxu0 0.0
          %758 = vmatprep.subr.mxu0 0.0
          %759 = vmatpush1.msra.mxu0 0.0
          %760 = vmatprep.subr.mxu0 0.0
          %761 = vmatpush1.msra.mxu0 0.0
          %762 = vmatprep.subr.mxu0 0.0
          %763 = vmatpush1.msra.mxu0 0.0
          %764 = vmatprep.subr.mxu0 0.0
          %765 = vmatpush1.msra.mxu0 0.0
          %766 = vmatprep.subr.mxu0 0.0
          %767 = vmatpush1.msra.mxu0 0.0
          %768 = vmatprep.subr.mxu0 0.0
          %769 = vmatpush1.msra.mxu0 %v751
          %770 = vmatprep.subr.mxu0 0.0
          %771 = vmatpush1.msra.mxu0 %v748
          %772 = vmatprep.subr.mxu0 0.0
          %773 = vmatpush1.msra.mxu0 %v745
          %774 = vmatprep.subr.mxu0 0.0
          %775 = vmatpush1.msra.mxu0 %v742
          %776 = vmatprep.subr.mxu0 0.0
          %777 = vmatpush1.msra.mxu0 %v739
          %778 = vmatprep.subr.mxu0 0.0
          %779 = vmatpush1.msra.mxu0 %v736
          %780 = vmatprep.subr.mxu0 0.0
          %781 = vmatpush1.msra.mxu0 %v733
          %782 = vmatprep.subr.mxu0 0.0
          %783 = vmatpush1.msra.mxu0 %v730
          %784 = vmatprep.subr.mxu0 0.0
          %785 = vmatpush2.msra.mxu0 0.0
          %786 = vmatprep.subr.mxu0 0.0
          %787 = vmatpush2.msra.mxu0 0.0
          %788 = vmatprep.subr.mxu0 0.0
          %789 = vmatpush2.msra.mxu0 0.0
          %790 = vmatprep.subr.mxu0 0.0
          %791 = vmatpush2.msra.mxu0 0.0
          %792 = vmatprep.subr.mxu0 0.0
          %793 = vmatpush2.msra.mxu0 0.0
          %794 = vmatprep.subr.mxu0 0.0
          %795 = vmatpush2.msra.mxu0 0.0
          %796 = vmatprep.subr.mxu0 0.0
          %797 = vmatpush2.msra.mxu0 0.0
          %798 = vmatprep.subr.mxu0 0.0
          %799 = vmatpush2.msra.mxu0 0.0
          %800 = vmatprep.subr.mxu0 0.0
          %801 = vmatpush2.msra.mxu0 0.0
          %802 = vmatprep.subr.mxu0 0.0
          %803 = vmatpush2.msra.mxu0 0.0
          %804 = vmatprep.subr.mxu0 0.0
          %805 = vmatpush2.msra.mxu0 0.0
          %806 = vmatprep.subr.mxu0 0.0
          %807 = vmatpush2.msra.mxu0 0.0
          %808 = vmatprep.subr.mxu0 0.0
          %809 = vmatpush2.msra.mxu0 0.0
          %810 = vmatprep.subr.mxu0 0.0
          %811 = vmatpush2.msra.mxu0 0.0
          %812 = vmatprep.subr.mxu0 0.0
          %813 = vmatpush2.msra.mxu0 0.0
          %814 = vmatprep.subr.mxu0 0.0
          %815 = vmatpush2.msra.mxu0 0.0
          %816 = vmatprep.mubr.f32.mxu0 0.0
          %817 = vmatmul.mubr.f32.gmra.mxu0 %v528
          %v818 = vpop.f32.mrf.mxu0
          %v819 = vadd.f32 1e-05, %v818
          %v820 = vpop.f32.mrf.mxu0
          %821 = vmatprep.mubr.f32.mxu0 0.0
          %822 = vmatmul.mubr.f32.gmra.mxu0 %v531
          %v823 = vpop.f32.mrf.mxu0
          %v824 = vadd.f32 1e-05, %v823
          %v825 = vpop.f32.mrf.mxu0
          %826 = vmatprep.mubr.f32.mxu0 0.0
          %827 = vmatmul.mubr.f32.gmra.mxu0 %v534
          %v828 = vpop.f32.mrf.mxu0
          %v829 = vadd.f32 1e-05, %v828
          %v830 = vpop.f32.mrf.mxu0
          %831 = vmatprep.mubr.f32.mxu0 0.0
          %832 = vmatmul.mubr.f32.gmra.mxu0 %v537
          %v833 = vpop.f32.mrf.mxu0
          %v834 = vadd.f32 1e-05, %v833
          %v835 = vpop.f32.mrf.mxu0
          %836 = vmatprep.mubr.f32.mxu0 0.0
          %837 = vmatmul.mubr.f32.gmra.mxu0 %v540
          %v838 = vpop.f32.mrf.mxu0
          %v839 = vadd.f32 1e-05, %v838
          %v840 = vpop.f32.mrf.mxu0
          %841 = vmatprep.mubr.f32.mxu0 0.0
          %842 = vmatmul.mubr.f32.gmra.mxu0 %v543
          %v843 = vpop.f32.mrf.mxu0
          %v844 = vadd.f32 1e-05, %v843
          %v845 = vpop.f32.mrf.mxu0
          %846 = vmatprep.mubr.f32.mxu0 0.0
          %847 = vmatmul.mubr.f32.gmra.mxu0 %v546
          %v848 = vpop.f32.mrf.mxu0
          %v849 = vadd.f32 1e-05, %v848
          %v850 = vpop.f32.mrf.mxu0
          %851 = vmatprep.mubr.f32.mxu0 0.0
          %852 = vmatmul.mubr.f32.gmra.mxu0 %v549
          %v853 = vpop.f32.mrf.mxu0
          %v854 = vadd.f32 1e-05, %v853
          %v855 = vpop.f32.mrf.mxu0
          %856 = vdwg.mxu0
          %v857 = vrsqrt.pop %v819
          %v858 = vrsqrt.pop %v824
          %v859 = vrsqrt.pop %v829
          %v860 = vrsqrt.pop %v834
          %v861 = vrsqrt.pop %v839
          %v862 = vrsqrt.pop %v844
          %v863 = vrsqrt.pop %v849
          %v864 = vrsqrt.pop %v854
          %v865 = vld [vmem:[%s8] sm:$0xff]
          %v866 = vld [vmem:[%s8 + $0x8] sm:$0xff]
          %v867 = vld [vmem:[%s8 + $0x10] sm:$0xff]
          %v868 = vld [vmem:[%s8 + $0x18] sm:$0xff]
          %v869 = vld [vmem:[%s8 + $0x20] sm:$0xff]
          %v870 = vld [vmem:[%s8 + $0x28] sm:$0xff]
          %v871 = vld [vmem:[%s8 + $0x30] sm:$0xff]
          %v872 = vld [vmem:[%s8 + $0x38] sm:$0xff]
          %v873 = vmul.f32 %v857, %v865
          %v874 = vmul.f32 %v858, %v866
          %v875 = vmul.f32 %v859, %v867
          %v876 = vmul.f32 %v860, %v868
          %v877 = vmul.f32 %v861, %v869
          %v878 = vmul.f32 %v862, %v870
          %v879 = vmul.f32 %v863, %v871
          %v880 = vmul.f32 %v864, %v872
          %882 = vset.pattern.permute.xlu0 0
          %883 = vperm.xlu0 %882, %v873
          %v884 = vpop.permute.xlu0 %883
          %887 = vset.pattern.permute.xlu0 0
          %888 = vperm.xlu0 %887, %v874
          %v889 = vpop.permute.xlu0 %888
          %892 = vset.pattern.permute.xlu0 0
          %893 = vperm.xlu0 %892, %v875
          %v894 = vpop.permute.xlu0 %893
          %897 = vset.pattern.permute.xlu0 0
          %898 = vperm.xlu0 %897, %v876
          %v899 = vpop.permute.xlu0 %898
          %902 = vset.pattern.permute.xlu0 0
          %903 = vperm.xlu0 %902, %v877
          %v904 = vpop.permute.xlu0 %903
          %907 = vset.pattern.permute.xlu0 0
          %908 = vperm.xlu0 %907, %v878
          %v909 = vpop.permute.xlu0 %908
          %912 = vset.pattern.permute.xlu0 0
          %913 = vperm.xlu0 %912, %v879
          %v914 = vpop.permute.xlu0 %913
          %917 = vset.pattern.permute.xlu0 0
          %918 = vperm.xlu0 %917, %v880
          %v919 = vpop.permute.xlu0 %918
          %v921 = vmul.f32 %v696, %v884
          %v922 = vmul.f32 %v697, %v884
          %v923 = vmul.f32 %v698, %v889
          %v924 = vmul.f32 %v699, %v889
          %v925 = vmul.f32 %v700, %v894
          %v926 = vmul.f32 %v701, %v894
          %v927 = vmul.f32 %v702, %v899
          %v928 = vmul.f32 %v703, %v899
          %v929 = vmul.f32 %v704, %v904
          %v930 = vmul.f32 %v705, %v904
          %v931 = vmul.f32 %v706, %v909
          %v932 = vmul.f32 %v707, %v909
          %v933 = vmul.f32 %v708, %v914
          %v934 = vmul.f32 %v709, %v914
          %v935 = vmul.f32 %v710, %v919
          %v936 = vmul.f32 %v711, %v919
          %v937 = vld [vmem:[%s9] sm:$0xff]
          %v938 = vld [vmem:[%s9 + $0x8] sm:$0xff]
          %v939 = vld [vmem:[%s9 + $0x10] sm:$0xff]
          %v940 = vld [vmem:[%s9 + $0x18] sm:$0xff]
          %v941 = vld [vmem:[%s9 + $0x20] sm:$0xff]
          %v942 = vld [vmem:[%s9 + $0x28] sm:$0xff]
          %v943 = vld [vmem:[%s9 + $0x30] sm:$0xff]
          %v944 = vld [vmem:[%s9 + $0x38] sm:$0xff]
          %946 = vset.pattern.permute.xlu0 0
          %947 = vperm.xlu0 %946, %v937
          %v948 = vpop.permute.xlu0 %947
          %951 = vset.pattern.permute.xlu0 0
          %952 = vperm.xlu0 %951, %v938
          %v953 = vpop.permute.xlu0 %952
          %956 = vset.pattern.permute.xlu0 0
          %957 = vperm.xlu0 %956, %v939
          %v958 = vpop.permute.xlu0 %957
          %961 = vset.pattern.permute.xlu0 0
          %962 = vperm.xlu0 %961, %v940
          %v963 = vpop.permute.xlu0 %962
          %966 = vset.pattern.permute.xlu0 0
          %967 = vperm.xlu0 %966, %v941
          %v968 = vpop.permute.xlu0 %967
          %971 = vset.pattern.permute.xlu0 0
          %972 = vperm.xlu0 %971, %v942
          %v973 = vpop.permute.xlu0 %972
          %976 = vset.pattern.permute.xlu0 0
          %977 = vperm.xlu0 %976, %v943
          %v978 = vpop.permute.xlu0 %977
          %981 = vset.pattern.permute.xlu0 0
          %982 = vperm.xlu0 %981, %v944
          %v983 = vpop.permute.xlu0 %982
          %v985 = vadd.f32 %v921, %v948
          %v986 = vadd.f32 %v922, %v948
          %v987 = vadd.f32 %v923, %v953
          %v988 = vadd.f32 %v924, %v953
          %v989 = vadd.f32 %v925, %v958
          %v990 = vadd.f32 %v926, %v958
          %v991 = vadd.f32 %v927, %v963
          %v992 = vadd.f32 %v928, %v963
          %v993 = vadd.f32 %v929, %v968
          %v994 = vadd.f32 %v930, %v968
          %v995 = vadd.f32 %v931, %v973
          %v996 = vadd.f32 %v932, %v973
          %v997 = vadd.f32 %v933, %v978
          %v998 = vadd.f32 %v934, %v978
          %v999 = vadd.f32 %v935, %v983
          %v1000 = vadd.f32 %v936, %v983
          %v1001 = vpack.c.bf16 %v987, %v985
          %v1002 = vpack.c.bf16 %v988, %v986
          %v1003 = vpack.c.bf16 %v991, %v989
          %v1004 = vpack.c.bf16 %v992, %v990
          %v1005 = vpack.c.bf16 %v995, %v993
          %v1006 = vpack.c.bf16 %v996, %v994
          %v1007 = vpack.c.bf16 %v999, %v997
          %v1008 = vpack.c.bf16 %v1000, %v998
          %v1017 = vunpack.c.l.b16 %v1001
          %v1018 = vunpack.c.l.b16 %v1002
          %v1019 = vunpack.c.h.b16 %v1001
          %v1020 = vunpack.c.h.b16 %v1002
          %v1021 = vunpack.c.l.b16 %v1003
          %v1022 = vunpack.c.l.b16 %v1004
          %v1023 = vunpack.c.h.b16 %v1003
          %v1024 = vunpack.c.h.b16 %v1004
          %v1025 = vunpack.c.l.b16 %v1005
          %v1026 = vunpack.c.l.b16 %v1006
          %v1027 = vunpack.c.h.b16 %v1005
          %v1028 = vunpack.c.h.b16 %v1006
          %v1029 = vunpack.c.l.b16 %v1007
          %v1030 = vunpack.c.l.b16 %v1008
          %v1031 = vunpack.c.h.b16 %v1007
          %v1032 = vunpack.c.h.b16 %v1008
          %v1033 = vpack.c.b16 %v1018, %v1017
          %v1034 = vpack.c.b16 %v1020, %v1019
          %v1035 = vpack.c.b16 %v1022, %v1021
          %v1036 = vpack.c.b16 %v1024, %v1023
          %v1037 = vpack.c.b16 %v1026, %v1025
          %v1038 = vpack.c.b16 %v1028, %v1027
          %v1039 = vpack.c.b16 %v1030, %v1029
          %v1040 = vpack.c.b16 %v1032, %v1031
          %1049 = vst [vmem:[#allocation2] sm:$0xff] %v1033
          %1050 = vst [vmem:[#allocation2 + $0x8] sm:$0xff] %v1034
          %1051 = vst [vmem:[#allocation2 + $0x10] sm:$0xff] %v1035
          %1052 = vst [vmem:[#allocation2 + $0x18] sm:$0xff] %v1036
          %1053 = vst [vmem:[#allocation2 + $0x20] sm:$0xff] %v1037
          %1054 = vst [vmem:[#allocation2 + $0x28] sm:$0xff] %v1038
          %1055 = vst [vmem:[#allocation2 + $0x30] sm:$0xff] %v1039
          %1056 = vst [vmem:[#allocation2 + $0x38] sm:$0xff] %v1040
          %v1057 = vld [vmem:[%s4] sm:$0xf]
          %v1058 = vld [vmem:[%s4 + $0x4] sm:$0xf]
          %v1059 = vld [vmem:[%s4 + $0x8] sm:$0xf]
          %v1060 = vld [vmem:[%s4 + $0xc] sm:$0xf]
          %v1061 = vld [vmem:[%s4 + $0x10] sm:$0xf]
          %v1062 = vld [vmem:[%s4 + $0x14] sm:$0xf]
          %v1063 = vld [vmem:[%s4 + $0x18] sm:$0xf]
          %v1064 = vld [vmem:[%s4 + $0x1c] sm:$0xf]
          %v1065 = vld [vmem:[%s5] sm:$0xff]
          %v1066 = vld [vmem:[%s5 + $0x8] sm:$0xff]
          %v1067 = vld [vmem:[%s5 + $0x10] sm:$0xff]
          %v1068 = vld [vmem:[%s5 + $0x18] sm:$0xff]
          %v1069 = vld [vmem:[%s5 + $0x20] sm:$0xff]
          %v1070 = vld [vmem:[%s5 + $0x28] sm:$0xff]
          %v1071 = vld [vmem:[%s5 + $0x30] sm:$0xff]
          %v1072 = vld [vmem:[%s5 + $0x38] sm:$0xff]
          %1074 = vset.pattern.permute.xlu0 0
          %1075 = vperm.xlu0 %1074, %v1065
          %v1076 = vpop.permute.xlu0 %1075
          %1079 = vset.pattern.permute.xlu0 0
          %1080 = vperm.xlu0 %1079, %v1066
          %v1081 = vpop.permute.xlu0 %1080
          %1084 = vset.pattern.permute.xlu0 0
          %1085 = vperm.xlu0 %1084, %v1067
          %v1086 = vpop.permute.xlu0 %1085
          %1089 = vset.pattern.permute.xlu0 0
          %1090 = vperm.xlu0 %1089, %v1068
          %v1091 = vpop.permute.xlu0 %1090
          %1094 = vset.pattern.permute.xlu0 0
          %1095 = vperm.xlu0 %1094, %v1069
          %v1096 = vpop.permute.xlu0 %1095
          %1099 = vset.pattern.permute.xlu0 0
          %1100 = vperm.xlu0 %1099, %v1070
          %v1101 = vpop.permute.xlu0 %1100
          %1104 = vset.pattern.permute.xlu0 0
          %1105 = vperm.xlu0 %1104, %v1071
          %v1106 = vpop.permute.xlu0 %1105
          %1109 = vset.pattern.permute.xlu0 0
          %1110 = vperm.xlu0 %1109, %v1072
          %v1111 = vpop.permute.xlu0 %1110
          %v1121 = vunpack.c.l.b16 %v1057
          %v1122 = vunpack.c.l.b16 %v1058
          %v1123 = vunpack.c.l.b16 %v1059
          %v1124 = vunpack.c.l.b16 %v1060
          %v1125 = vunpack.c.l.b16 %v1061
          %v1126 = vunpack.c.l.b16 %v1062
          %v1127 = vunpack.c.l.b16 %v1063
          %v1128 = vunpack.c.l.b16 %v1064
          %v1129 = vpack.c.b16 %v1122, %v1121
          %v1130 = vpack.c.b16 %v1124, %v1123
          %v1131 = vpack.c.b16 %v1126, %v1125
          %v1132 = vpack.c.b16 %v1128, %v1127
          %v1134 = vsel %vm526, %v1129, 0
          %v1137 = vsel %vm526, %v1130, 0
          %v1140 = vsel %vm526, %v1131, 0
          %v1143 = vsel %vm526, %v1132, 0
          %1145 = vmatprep.subr.bf16.mxu0 0
          %1146 = vmatpush1.bf16.msra.mxu0 0
          %1147 = vmatprep.subr.bf16.mxu0 0
          %1148 = vmatpush1.bf16.msra.mxu0 0
          %1149 = vmatprep.subr.bf16.mxu0 0
          %1150 = vmatpush1.bf16.msra.mxu0 0
          %1151 = vmatprep.subr.bf16.mxu0 0
          %1152 = vmatpush1.bf16.msra.mxu0 0
          %1153 = vmatprep.subr.bf16.mxu0 %v1008
          %1154 = vmatpush1.bf16.msra.mxu0 %v1007
          %1155 = vmatprep.subr.bf16.mxu0 %v1006
          %1156 = vmatpush1.bf16.msra.mxu0 %v1005
          %1157 = vmatprep.subr.bf16.mxu0 %v1004
          %1158 = vmatpush1.bf16.msra.mxu0 %v1003
          %1159 = vmatprep.subr.bf16.mxu0 %v1002
          %1160 = vmatpush1.bf16.msra.mxu0 %v1001
          %1161 = vmatprep.subr.bf16.mxu0 0
          %1162 = vmatpush2.bf16.msra.mxu0 0
          %1163 = vmatprep.subr.bf16.mxu0 0
          %1164 = vmatpush2.bf16.msra.mxu0 0
          %1165 = vmatprep.subr.bf16.mxu0 0
          %1166 = vmatpush2.bf16.msra.mxu0 0
          %1167 = vmatprep.subr.bf16.mxu0 0
          %1168 = vmatpush2.bf16.msra.mxu0 0
          %1169 = vmatprep.subr.bf16.mxu0 0
          %1170 = vmatpush2.bf16.msra.mxu0 0
          %1171 = vmatprep.subr.bf16.mxu0 0
          %1172 = vmatpush2.bf16.msra.mxu0 0
          %1173 = vmatprep.subr.bf16.mxu0 0
          %1174 = vmatpush2.bf16.msra.mxu0 0
          %1175 = vmatprep.subr.bf16.mxu0 0
          %1176 = vmatpush2.bf16.msra.mxu0 0
          %1177 = vmatprep.mubr.bf16.mxu0 0
          %1178 = vmatmul.mubr.bf16.gmra.mxu0 %v1134
          %v1179 = vpop.f32.mrf.mxu0
          %v1180 = vadd.f32 %v1076, %v1179
          %v1181 = vpop.f32.mrf.mxu0
          %v1182 = vadd.f32 %v1076, %v1181
          %v1183 = vpop.f32.mrf.mxu0
          %v1184 = vadd.f32 %v1081, %v1183
          %v1185 = vpop.f32.mrf.mxu0
          %v1186 = vadd.f32 %v1081, %v1185
          %1187 = vmatprep.mubr.bf16.mxu0 0
          %1188 = vmatmul.mubr.bf16.gmra.mxu0 %v1137
          %v1189 = vpop.f32.mrf.mxu0
          %v1190 = vadd.f32 %v1086, %v1189
          %v1191 = vpop.f32.mrf.mxu0
          %v1192 = vadd.f32 %v1086, %v1191
          %v1193 = vpop.f32.mrf.mxu0
          %v1194 = vadd.f32 %v1091, %v1193
          %v1195 = vpop.f32.mrf.mxu0
          %v1196 = vadd.f32 %v1091, %v1195
          %1197 = vmatprep.mubr.bf16.mxu0 0
          %1198 = vmatmul.mubr.bf16.gmra.mxu0 %v1140
          %v1199 = vpop.f32.mrf.mxu0
          %v1200 = vadd.f32 %v1096, %v1199
          %v1201 = vpop.f32.mrf.mxu0
          %v1202 = vadd.f32 %v1096, %v1201
          %v1203 = vpop.f32.mrf.mxu0
          %v1204 = vadd.f32 %v1101, %v1203
          %v1205 = vpop.f32.mrf.mxu0
          %v1206 = vadd.f32 %v1101, %v1205
          %1207 = vmatprep.mubr.bf16.mxu0 0
          %1208 = vmatmul.mubr.bf16.gmra.mxu0 %v1143
          %v1209 = vpop.f32.mrf.mxu0
          %v1210 = vadd.f32 %v1106, %v1209
          %v1211 = vpop.f32.mrf.mxu0
          %v1212 = vadd.f32 %v1106, %v1211
          %v1213 = vpop.f32.mrf.mxu0
          %v1214 = vadd.f32 %v1111, %v1213
          %v1215 = vpop.f32.mrf.mxu0
          %v1216 = vadd.f32 %v1111, %v1215
          %1217 = vdwg.mxu0
          %v1218 = vld [vmem:[%s6] sm:$0xf]
          %v1219 = vld [vmem:[%s6 + $0x4] sm:$0xf]
          %v1220 = vld [vmem:[%s6 + $0x8] sm:$0xf]
          %v1221 = vld [vmem:[%s6 + $0xc] sm:$0xf]
          %v1222 = vld [vmem:[%s6 + $0x10] sm:$0xf]
          %v1223 = vld [vmem:[%s6 + $0x14] sm:$0xf]
          %v1224 = vld [vmem:[%s6 + $0x18] sm:$0xf]
          %v1225 = vld [vmem:[%s6 + $0x1c] sm:$0xf]
          %v1226 = vld [vmem:[%s7] sm:$0xff]
          %v1227 = vld [vmem:[%s7 + $0x8] sm:$0xff]
          %v1228 = vld [vmem:[%s7 + $0x10] sm:$0xff]
          %v1229 = vld [vmem:[%s7 + $0x18] sm:$0xff]
          %v1230 = vld [vmem:[%s7 + $0x20] sm:$0xff]
          %v1231 = vld [vmem:[%s7 + $0x28] sm:$0xff]
          %v1232 = vld [vmem:[%s7 + $0x30] sm:$0xff]
          %v1233 = vld [vmem:[%s7 + $0x38] sm:$0xff]
          %1235 = vset.pattern.permute.xlu0 0
          %1236 = vperm.xlu0 %1235, %v1226
          %v1237 = vpop.permute.xlu0 %1236
          %1240 = vset.pattern.permute.xlu0 0
          %1241 = vperm.xlu0 %1240, %v1227
          %v1242 = vpop.permute.xlu0 %1241
          %1245 = vset.pattern.permute.xlu0 0
          %1246 = vperm.xlu0 %1245, %v1228
          %v1247 = vpop.permute.xlu0 %1246
          %1250 = vset.pattern.permute.xlu0 0
          %1251 = vperm.xlu0 %1250, %v1229
          %v1252 = vpop.permute.xlu0 %1251
          %1255 = vset.pattern.permute.xlu0 0
          %1256 = vperm.xlu0 %1255, %v1230
          %v1257 = vpop.permute.xlu0 %1256
          %1260 = vset.pattern.permute.xlu0 0
          %1261 = vperm.xlu0 %1260, %v1231
          %v1262 = vpop.permute.xlu0 %1261
          %1265 = vset.pattern.permute.xlu0 0
          %1266 = vperm.xlu0 %1265, %v1232
          %v1267 = vpop.permute.xlu0 %1266
          %1270 = vset.pattern.permute.xlu0 0
          %1271 = vperm.xlu0 %1270, %v1233
          %v1272 = vpop.permute.xlu0 %1271
          %v1282 = vunpack.c.l.b16 %v1218
          %v1283 = vunpack.c.l.b16 %v1219
          %v1284 = vunpack.c.l.b16 %v1220
          %v1285 = vunpack.c.l.b16 %v1221
          %v1286 = vunpack.c.l.b16 %v1222
          %v1287 = vunpack.c.l.b16 %v1223
          %v1288 = vunpack.c.l.b16 %v1224
          %v1289 = vunpack.c.l.b16 %v1225
          %v1290 = vpack.c.b16 %v1283, %v1282
          %v1291 = vpack.c.b16 %v1285, %v1284
          %v1292 = vpack.c.b16 %v1287, %v1286
          %v1293 = vpack.c.b16 %v1289, %v1288
          %v1295 = vsel %vm526, %v1290, 0
          %v1298 = vsel %vm526, %v1291, 0
          %v1301 = vsel %vm526, %v1292, 0
          %v1304 = vsel %vm526, %v1293, 0
          %1306 = vmatprep.subr.bf16.mxu0 0
          %1307 = vmatpush1.bf16.msra.mxu0 0
          %1308 = vmatprep.subr.bf16.mxu0 0
          %1309 = vmatpush1.bf16.msra.mxu0 0
          %1310 = vmatprep.subr.bf16.mxu0 0
          %1311 = vmatpush1.bf16.msra.mxu0 0
          %1312 = vmatprep.subr.bf16.mxu0 0
          %1313 = vmatpush1.bf16.msra.mxu0 0
          %1314 = vmatprep.subr.bf16.mxu0 %v1008
          %1315 = vmatpush1.bf16.msra.mxu0 %v1007
          %1316 = vmatprep.subr.bf16.mxu0 %v1006
          %1317 = vmatpush1.bf16.msra.mxu0 %v1005
          %1318 = vmatprep.subr.bf16.mxu0 %v1004
          %1319 = vmatpush1.bf16.msra.mxu0 %v1003
          %1320 = vmatprep.subr.bf16.mxu0 %v1002
          %1321 = vmatpush1.bf16.msra.mxu0 %v1001
          %1322 = vmatprep.subr.bf16.mxu0 0
          %1323 = vmatpush2.bf16.msra.mxu0 0
          %1324 = vmatprep.subr.bf16.mxu0 0
          %1325 = vmatpush2.bf16.msra.mxu0 0
          %1326 = vmatprep.subr.bf16.mxu0 0
          %1327 = vmatpush2.bf16.msra.mxu0 0
          %1328 = vmatprep.subr.bf16.mxu0 0
          %1329 = vmatpush2.bf16.msra.mxu0 0
          %1330 = vmatprep.subr.bf16.mxu0 0
          %1331 = vmatpush2.bf16.msra.mxu0 0
          %1332 = vmatprep.subr.bf16.mxu0 0
          %1333 = vmatpush2.bf16.msra.mxu0 0
          %1334 = vmatprep.subr.bf16.mxu0 0
          %1335 = vmatpush2.bf16.msra.mxu0 0
          %1336 = vmatprep.subr.bf16.mxu0 0
          %1337 = vmatpush2.bf16.msra.mxu0 0
          %1338 = vmatprep.mubr.bf16.mxu0 0
          %1339 = vmatmul.mubr.bf16.gmra.mxu0 %v1295
          %v1340 = vpop.f32.mrf.mxu0
          %v1341 = vadd.f32 %v1237, %v1340
          %v1342 = vpop.f32.mrf.mxu0
          %v1343 = vadd.f32 %v1237, %v1342
          %v1344 = vpop.f32.mrf.mxu0
          %v1345 = vadd.f32 %v1242, %v1344
          %v1346 = vpop.f32.mrf.mxu0
          %v1347 = vadd.f32 %v1242, %v1346
          %1348 = vmatprep.mubr.bf16.mxu0 0
          %1349 = vmatmul.mubr.bf16.gmra.mxu0 %v1298
          %v1350 = vpop.f32.mrf.mxu0
          %v1351 = vadd.f32 %v1247, %v1350
          %v1352 = vpop.f32.mrf.mxu0
          %v1353 = vadd.f32 %v1247, %v1352
          %v1354 = vpop.f32.mrf.mxu0
          %v1355 = vadd.f32 %v1252, %v1354
          %v1356 = vpop.f32.mrf.mxu0
          %v1357 = vadd.f32 %v1252, %v1356
          %1358 = vmatprep.mubr.bf16.mxu0 0
          %1359 = vmatmul.mubr.bf16.gmra.mxu0 %v1301
          %v1360 = vpop.f32.mrf.mxu0
          %v1361 = vadd.f32 %v1257, %v1360
          %v1362 = vpop.f32.mrf.mxu0
          %v1363 = vadd.f32 %v1257, %v1362
          %v1364 = vpop.f32.mrf.mxu0
          %v1365 = vadd.f32 %v1262, %v1364
          %v1366 = vpop.f32.mrf.mxu0
          %v1367 = vadd.f32 %v1262, %v1366
          %1368 = vmatprep.mubr.bf16.mxu0 0
          %1369 = vmatmul.mubr.bf16.gmra.mxu0 %v1304
          %v1370 = vpop.f32.mrf.mxu0
          %v1371 = vadd.f32 %v1267, %v1370
          %v1372 = vpop.f32.mrf.mxu0
          %v1373 = vadd.f32 %v1267, %v1372
          %v1374 = vpop.f32.mrf.mxu0
          %v1375 = vadd.f32 %v1272, %v1374
          %v1376 = vpop.f32.mrf.mxu0
          %v1377 = vadd.f32 %v1272, %v1376
          %1378 = vdwg.mxu0
          %v1379 = vpack.c.bf16 %v1184, %v1180
          %v1380 = vpack.c.bf16 %v1186, %v1182
          %v1381 = vpack.c.bf16 %v1194, %v1190
          %v1382 = vpack.c.bf16 %v1196, %v1192
          %v1383 = vpack.c.bf16 %v1204, %v1200
          %v1384 = vpack.c.bf16 %v1206, %v1202
          %v1385 = vpack.c.bf16 %v1214, %v1210
          %v1386 = vpack.c.bf16 %v1216, %v1212
          %v1395 = vunpack.c.l.b16 %v1379
          %v1396 = vunpack.c.l.b16 %v1380
          %v1397 = vunpack.c.h.b16 %v1379
          %v1398 = vunpack.c.h.b16 %v1380
          %v1399 = vunpack.c.l.b16 %v1381
          %v1400 = vunpack.c.l.b16 %v1382
          %v1401 = vunpack.c.h.b16 %v1381
          %v1402 = vunpack.c.h.b16 %v1382
          %v1403 = vunpack.c.l.b16 %v1383
          %v1404 = vunpack.c.l.b16 %v1384
          %v1405 = vunpack.c.h.b16 %v1383
          %v1406 = vunpack.c.h.b16 %v1384
          %v1407 = vunpack.c.l.b16 %v1385
          %v1408 = vunpack.c.l.b16 %v1386
          %v1409 = vunpack.c.h.b16 %v1385
          %v1410 = vunpack.c.h.b16 %v1386
          %v1411 = vpack.c.b16 %v1396, %v1395
          %v1412 = vpack.c.b16 %v1398, %v1397
          %v1413 = vpack.c.b16 %v1400, %v1399
          %v1414 = vpack.c.b16 %v1402, %v1401
          %v1415 = vpack.c.b16 %v1404, %v1403
          %v1416 = vpack.c.b16 %v1406, %v1405
          %v1417 = vpack.c.b16 %v1408, %v1407
          %v1418 = vpack.c.b16 %v1410, %v1409
          %1427 = vst [vmem:[#allocation3] sm:$0xff] %v1411
          %1428 = vst [vmem:[#allocation3 + $0x8] sm:$0xff] %v1412
          %1429 = vst [vmem:[#allocation3 + $0x10] sm:$0xff] %v1413
          %1430 = vst [vmem:[#allocation3 + $0x18] sm:$0xff] %v1414
          %1431 = vst [vmem:[#allocation3 + $0x20] sm:$0xff] %v1415
          %1432 = vst [vmem:[#allocation3 + $0x28] sm:$0xff] %v1416
          %1433 = vst [vmem:[#allocation3 + $0x30] sm:$0xff] %v1417
          %1434 = vst [vmem:[#allocation3 + $0x38] sm:$0xff] %v1418
          %v1435 = vpack.c.bf16 %v1345, %v1341
          %v1436 = vpack.c.bf16 %v1347, %v1343
          %v1437 = vpack.c.bf16 %v1355, %v1351
          %v1438 = vpack.c.bf16 %v1357, %v1353
          %v1439 = vpack.c.bf16 %v1365, %v1361
          %v1440 = vpack.c.bf16 %v1367, %v1363
          %v1441 = vpack.c.bf16 %v1375, %v1371
          %v1442 = vpack.c.bf16 %v1377, %v1373
          %v1451 = vunpack.c.l.b16 %v1435
          %v1452 = vunpack.c.l.b16 %v1436
          %v1453 = vunpack.c.h.b16 %v1435
          %v1454 = vunpack.c.h.b16 %v1436
          %v1455 = vunpack.c.l.b16 %v1437
          %v1456 = vunpack.c.l.b16 %v1438
          %v1457 = vunpack.c.h.b16 %v1437
          %v1458 = vunpack.c.h.b16 %v1438
          %v1459 = vunpack.c.l.b16 %v1439
          %v1460 = vunpack.c.l.b16 %v1440
          %v1461 = vunpack.c.h.b16 %v1439
          %v1462 = vunpack.c.h.b16 %v1440
          %v1463 = vunpack.c.l.b16 %v1441
          %v1464 = vunpack.c.l.b16 %v1442
          %v1465 = vunpack.c.h.b16 %v1441
          %v1466 = vunpack.c.h.b16 %v1442
          %v1467 = vpack.c.b16 %v1452, %v1451
          %v1468 = vpack.c.b16 %v1454, %v1453
          %v1469 = vpack.c.b16 %v1456, %v1455
          %v1470 = vpack.c.b16 %v1458, %v1457
          %v1471 = vpack.c.b16 %v1460, %v1459
          %v1472 = vpack.c.b16 %v1462, %v1461
          %v1473 = vpack.c.b16 %v1464, %v1463
          %v1474 = vpack.c.b16 %v1466, %v1465
          %1483 = vst [vmem:[#allocation4] sm:$0xff] %v1467
          %1484 = vst [vmem:[#allocation4 + $0x8] sm:$0xff] %v1468
          %1485 = vst [vmem:[#allocation4 + $0x10] sm:$0xff] %v1469
          %1486 = vst [vmem:[#allocation4 + $0x18] sm:$0xff] %v1470
          %1487 = vst [vmem:[#allocation4 + $0x20] sm:$0xff] %v1471
          %1488 = vst [vmem:[#allocation4 + $0x28] sm:$0xff] %v1472
          %1489 = vst [vmem:[#allocation4 + $0x30] sm:$0xff] %v1473
          %1490 = vst [vmem:[#allocation4 + $0x38] sm:$0xff] %v1474
        $region76: #{tpu_custom_call.1} parent=67 // pred_fallthru
          _
        %s1491 = smul.u32 %s37, 128
        // Predicated region
        $region77: #{tpu_custom_call.1} parent=67 // pred_check
          %p1492 = pneg %p473
        $region78: #{tpu_custom_call.1} parent=67 // pred_check_branch
          %1494 = sbr.rel (%p1492) target = $region80
        $region79: #{tpu_custom_call.1} parent=67 // pred_region
          %s1495 = sshra.s32 %s1491, 7
          %s1496 = sand.u32 %s1491, 127
          %s1497 = smul.addr %s1495, 4
          %s1498 = scalar_lea.vmem [#allocation2], %s1497
          %v1499 = vld [vmem:[%s1498] sm:$0xf]
          %v1500 = vld [vmem:[%s1498 + $0x8] sm:$0xf]
          %v1501 = vld [vmem:[%s1498 + $0x10] sm:$0xf]
          %v1502 = vld [vmem:[%s1498 + $0x18] sm:$0xf]
          %v1503 = vld [vmem:[%s1498 + $0x20] sm:$0xf]
          %v1504 = vld [vmem:[%s1498 + $0x28] sm:$0xf]
          %v1505 = vld [vmem:[%s1498 + $0x30] sm:$0xf]
          %v1506 = vld [vmem:[%s1498 + $0x38] sm:$0xf]
          %v1507 = vld [vmem:[%s2] sm:$0xf]
          %v1508 = vld [vmem:[%s2 + $0x4] sm:$0xf]
          %v1509 = vld [vmem:[%s2 + $0x8] sm:$0xf]
          %v1510 = vld [vmem:[%s2 + $0xc] sm:$0xf]
          %v1511 = vld [vmem:[%s2 + $0x10] sm:$0xf]
          %v1512 = vld [vmem:[%s2 + $0x14] sm:$0xf]
          %v1513 = vld [vmem:[%s2 + $0x18] sm:$0xf]
          %v1514 = vld [vmem:[%s2 + $0x1c] sm:$0xf]
          %v1515 = vld [vmem:[%s3] sm:$0xff]
          %v1516 = vld [vmem:[%s3 + $0x8] sm:$0xff]
          %v1517 = vld [vmem:[%s3 + $0x10] sm:$0xff]
          %v1518 = vld [vmem:[%s3 + $0x18] sm:$0xff]
          %v1519 = vld [vmem:[%s3 + $0x20] sm:$0xff]
          %v1520 = vld [vmem:[%s3 + $0x28] sm:$0xff]
          %v1521 = vld [vmem:[%s3 + $0x30] sm:$0xff]
          %v1522 = vld [vmem:[%s3 + $0x38] sm:$0xff]
          %1524 = vset.pattern.permute.xlu0 0
          %1525 = vperm.xlu0 %1524, %v1515
          %v1526 = vpop.permute.xlu0 %1525
          %1529 = vset.pattern.permute.xlu0 0
          %1530 = vperm.xlu0 %1529, %v1516
          %v1531 = vpop.permute.xlu0 %1530
          %1534 = vset.pattern.permute.xlu0 0
          %1535 = vperm.xlu0 %1534, %v1517
          %v1536 = vpop.permute.xlu0 %1535
          %1539 = vset.pattern.permute.xlu0 0
          %1540 = vperm.xlu0 %1539, %v1518
          %v1541 = vpop.permute.xlu0 %1540
          %1544 = vset.pattern.permute.xlu0 0
          %1545 = vperm.xlu0 %1544, %v1519
          %v1546 = vpop.permute.xlu0 %1545
          %1549 = vset.pattern.permute.xlu0 0
          %1550 = vperm.xlu0 %1549, %v1520
          %v1551 = vpop.permute.xlu0 %1550
          %1554 = vset.pattern.permute.xlu0 0
          %1555 = vperm.xlu0 %1554, %v1521
          %v1556 = vpop.permute.xlu0 %1555
          %1559 = vset.pattern.permute.xlu0 0
          %1560 = vperm.xlu0 %1559, %v1522
          %v1561 = vpop.permute.xlu0 %1560
          %v1571 = vunpack.c.l.b16 %v1507
          %v1572 = vunpack.c.l.b16 %v1508
          %v1573 = vunpack.c.l.b16 %v1509
          %v1574 = vunpack.c.l.b16 %v1510
          %v1575 = vunpack.c.l.b16 %v1511
          %v1576 = vunpack.c.l.b16 %v1512
          %v1577 = vunpack.c.l.b16 %v1513
          %v1578 = vunpack.c.l.b16 %v1514
          %v1579 = vpack.c.b16 %v1572, %v1571
          %v1580 = vpack.c.b16 %v1574, %v1573
          %v1581 = vpack.c.b16 %v1576, %v1575
          %v1582 = vpack.c.b16 %v1578, %v1577
          %v1591 = vunpack.c.l.b16 %v1499
          %v1592 = vunpack.c.l.b16 %v1500
          %v1593 = vunpack.c.l.b16 %v1501
          %v1594 = vunpack.c.l.b16 %v1502
          %v1595 = vunpack.c.l.b16 %v1503
          %v1596 = vunpack.c.l.b16 %v1504
          %v1597 = vunpack.c.l.b16 %v1505
          %v1598 = vunpack.c.l.b16 %v1506
          %v1599 = vpack.c.b16 %v1592, %v1591
          %v1600 = vpack.c.b16 %v1594, %v1593
          %v1601 = vpack.c.b16 %v1596, %v1595
          %v1602 = vpack.c.b16 %v1598, %v1597
          %vm1607 = vcmask 523264
          %v1609 = vsel %vm1607, %v1579, 0
          %v1612 = vsel %vm1607, %v1580, 0
          %v1615 = vsel %vm1607, %v1581, 0
          %v1618 = vsel %vm1607, %v1582, 0
          %1620 = vmatprep.subr.bf16.mxu0 0
          %1621 = vmatpush1.bf16.msra.mxu0 0
          %1622 = vmatprep.subr.bf16.mxu0 0
          %1623 = vmatpush1.bf16.msra.mxu0 0
          %1624 = vmatprep.subr.bf16.mxu0 0
          %1625 = vmatpush1.bf16.msra.mxu0 0
          %1626 = vmatprep.subr.bf16.mxu0 0
          %1627 = vmatpush1.bf16.msra.mxu0 0
          %1628 = vmatprep.subr.bf16.mxu0 0
          %1629 = vmatpush1.bf16.msra.mxu0 %v1602
          %1630 = vmatprep.subr.bf16.mxu0 0
          %1631 = vmatpush1.bf16.msra.mxu0 %v1601
          %1632 = vmatprep.subr.bf16.mxu0 0
          %1633 = vmatpush1.bf16.msra.mxu0 %v1600
          %1634 = vmatprep.subr.bf16.mxu0 0
          %1635 = vmatpush1.bf16.msra.mxu0 %v1599
          %1636 = vmatprep.subr.bf16.mxu0 0
          %1637 = vmatpush2.bf16.msra.mxu0 0
          %1638 = vmatprep.subr.bf16.mxu0 0
          %1639 = vmatpush2.bf16.msra.mxu0 0
          %1640 = vmatprep.subr.bf16.mxu0 0
          %1641 = vmatpush2.bf16.msra.mxu0 0
          %1642 = vmatprep.subr.bf16.mxu0 0
          %1643 = vmatpush2.bf16.msra.mxu0 0
          %1644 = vmatprep.subr.bf16.mxu0 0
          %1645 = vmatpush2.bf16.msra.mxu0 0
          %1646 = vmatprep.subr.bf16.mxu0 0
          %1647 = vmatpush2.bf16.msra.mxu0 0
          %1648 = vmatprep.subr.bf16.mxu0 0
          %1649 = vmatpush2.bf16.msra.mxu0 0
          %1650 = vmatprep.subr.bf16.mxu0 0
          %1651 = vmatpush2.bf16.msra.mxu0 0
          %1652 = vmatprep.mubr.bf16.mxu0 0
          %1653 = vmatmul.mubr.bf16.gmra.mxu0 %v1609
          %v1654 = vpop.f32.mrf.mxu0
          %v1655 = vadd.f32 %v1526, %v1654
          %v1656 = vpop.f32.mrf.mxu0
          %v1657 = vpop.f32.mrf.mxu0
          %v1658 = vadd.f32 %v1531, %v1657
          %v1659 = vpop.f32.mrf.mxu0
          %1660 = vmatprep.mubr.bf16.mxu0 0
          %1661 = vmatmul.mubr.bf16.gmra.mxu0 %v1612
          %v1662 = vpop.f32.mrf.mxu0
          %v1663 = vadd.f32 %v1536, %v1662
          %v1664 = vpop.f32.mrf.mxu0
          %v1665 = vpop.f32.mrf.mxu0
          %v1666 = vadd.f32 %v1541, %v1665
          %v1667 = vpop.f32.mrf.mxu0
          %1668 = vmatprep.mubr.bf16.mxu0 0
          %1669 = vmatmul.mubr.bf16.gmra.mxu0 %v1615
          %v1670 = vpop.f32.mrf.mxu0
          %v1671 = vadd.f32 %v1546, %v1670
          %v1672 = vpop.f32.mrf.mxu0
          %v1673 = vpop.f32.mrf.mxu0
          %v1674 = vadd.f32 %v1551, %v1673
          %v1675 = vpop.f32.mrf.mxu0
          %1676 = vmatprep.mubr.bf16.mxu0 0
          %1677 = vmatmul.mubr.bf16.gmra.mxu0 %v1618
          %v1678 = vpop.f32.mrf.mxu0
          %v1679 = vadd.f32 %v1556, %v1678
          %v1680 = vpop.f32.mrf.mxu0
          %v1681 = vpop.f32.mrf.mxu0
          %v1682 = vadd.f32 %v1561, %v1681
          %v1683 = vpop.f32.mrf.mxu0
          %1684 = vdwg.mxu0
          %v1685 = vpack.c.bf16 %v1658, %v1655
          %v1686 = vpack.c.bf16 %v1666, %v1663
          %v1687 = vpack.c.bf16 %v1674, %v1671
          %v1688 = vpack.c.bf16 %v1682, %v1679
          %v1693 = vunpack.c.l.b16 %v1685
          %v1694 = vunpack.c.h.b16 %v1685
          %v1695 = vunpack.c.l.b16 %v1686
          %v1696 = vunpack.c.h.b16 %v1686
          %v1697 = vunpack.c.l.b16 %v1687
          %v1698 = vunpack.c.h.b16 %v1687
          %v1699 = vunpack.c.l.b16 %v1688
          %v1700 = vunpack.c.h.b16 %v1688
          %v1701 = vpack.c.b16 %v1693, %v1693
          %v1702 = vpack.c.b16 %v1694, %v1694
          %v1703 = vpack.c.b16 %v1695, %v1695
          %v1704 = vpack.c.b16 %v1696, %v1696
          %v1705 = vpack.c.b16 %v1697, %v1697
          %v1706 = vpack.c.b16 %v1698, %v1698
          %v1707 = vpack.c.b16 %v1699, %v1699
          %v1708 = vpack.c.b16 %v1700, %v1700
          %1717 = vst [vmem:[#allocation5] sm:$0xf] %v1701
          %1718 = vst [vmem:[#allocation5 + $0x4] sm:$0xf] %v1702
          %1719 = vst [vmem:[#allocation5 + $0x8] sm:$0xf] %v1703
          %1720 = vst [vmem:[#allocation5 + $0xc] sm:$0xf] %v1704
          %1721 = vst [vmem:[#allocation5 + $0x10] sm:$0xf] %v1705
          %1722 = vst [vmem:[#allocation5 + $0x14] sm:$0xf] %v1706
          %1723 = vst [vmem:[#allocation5 + $0x18] sm:$0xf] %v1707
          %1724 = vst [vmem:[#allocation5 + $0x1c] sm:$0xf] %v1708
        $region80: #{tpu_custom_call.1} parent=67 // pred_fallthru
          _
        %s1725 = smul.u32 %s38, 16
        %s1726 = sshra.s32 %s1725, 3
        %s1727 = sand.u32 %s1725, 7
        %s1728 = smul.addr %s1726, 4
        %s1729 = scalar_lea.vmem [#allocation5], %s1728
        %v1730 = vld [vmem:[%s1729] sm:$0xf]
        %v1731 = vld [vmem:[%s1729 + $0x4] sm:$0xf]
        %s1732 = smul.u32 %s1726, 2
        %s1733 = smul.addr %s1732, 4
        %s1734 = scalar_lea.vmem [#allocation3], %s1733
        %v1735 = vld [vmem:[%s1734] sm:$0xff]
        %v1736 = vld [vmem:[%s1734 + $0x8] sm:$0xff]
        %s1737 = smul.addr %s1732, 4
        %s1738 = scalar_lea.vmem [#allocation4], %s1737
        %v1739 = vld [vmem:[%s1738] sm:$0xff]
        %v1740 = vld [vmem:[%s1738 + $0x8] sm:$0xff]
        %v1743 = vunpack.c.l.b16 %v1730
        %v1744 = vunpack.c.l.b16 %v1731
        %v1745 = vpack.c.b16 %v1744, %v1743
        %1747 = vxpose.xlu0.c.b16.start [1/8] %v1745, 128
        %1748 = vxpose.xlu0.c.b16.cont [2/8] 0, 128
        %1749 = vxpose.xlu0.c.b16.cont [3/8] 0, 128
        %1750 = vxpose.xlu0.c.b16.cont [4/8] 0, 128
        %1751 = vxpose.xlu0.c.b16.cont [5/8] 0, 128
        %1752 = vxpose.xlu0.c.b16.cont [6/8] 0, 128
        %1753 = vxpose.xlu0.c.b16.cont [7/8] 0, 128
        %1754 = vxpose.xlu0.c.b16.end [8/8] 0, 128
        %v1755 = vpop.trf.xlu0
        %v1756 = vpop.trf.xlu0
        %v1757 = vpop.trf.xlu0
        %v1758 = vpop.trf.xlu0
        %v1759 = vpop.trf.xlu0
        %v1760 = vpop.trf.xlu0
        %v1761 = vpop.trf.xlu0
        %v1762 = vpop.trf.xlu0
        %v1765 = vunpack.c.l.b16 %v1735
        %v1766 = vunpack.c.h.b16 %v1735
        %v1767 = vunpack.c.l.b16 %v1736
        %v1768 = vunpack.c.h.b16 %v1736
        %v1769 = vpack.c.b16 %v1767, %v1765
        %v1770 = vpack.c.b16 %v1768, %v1766
        %vm1773 = vcmask 130048
        %v1775 = vsel %vm1773, %v1755, 0
        %v1778 = vsel %vm1773, %v1756, 0
        %v1781 = vsel %vm1773, %v1757, 0
        %v1784 = vsel %vm1773, %v1758, 0
        %v1787 = vsel %vm1773, %v1759, 0
        %v1790 = vsel %vm1773, %v1760, 0
        %v1793 = vsel %vm1773, %v1761, 0
        %v1796 = vsel %vm1773, %v1762, 0
        %1798 = vmatprep.subr.bf16.mxu0 0
        %1799 = vmatpush1.bf16.msra.mxu0 0
        %1800 = vmatprep.subr.bf16.mxu0 0
        %1801 = vmatpush1.bf16.msra.mxu0 0
        %1802 = vmatprep.subr.bf16.mxu0 0
        %1803 = vmatpush1.bf16.msra.mxu0 0
        %1804 = vmatprep.subr.bf16.mxu0 0
        %1805 = vmatpush1.bf16.msra.mxu0 0
        %1806 = vmatprep.subr.bf16.mxu0 0
        %1807 = vmatpush1.bf16.msra.mxu0 0
        %1808 = vmatprep.subr.bf16.mxu0 0
        %1809 = vmatpush1.bf16.msra.mxu0 0
        %1810 = vmatprep.subr.bf16.mxu0 0
        %1811 = vmatpush1.bf16.msra.mxu0 0
        %1812 = vmatprep.subr.bf16.mxu0 %v1770
        %1813 = vmatpush1.bf16.msra.mxu0 %v1769
        %1814 = vmatprep.subr.bf16.mxu0 0
        %1815 = vmatpush2.bf16.msra.mxu0 0
        %1816 = vmatprep.subr.bf16.mxu0 0
        %1817 = vmatpush2.bf16.msra.mxu0 0
        %1818 = vmatprep.subr.bf16.mxu0 0
        %1819 = vmatpush2.bf16.msra.mxu0 0
        %1820 = vmatprep.subr.bf16.mxu0 0
        %1821 = vmatpush2.bf16.msra.mxu0 0
        %1822 = vmatprep.subr.bf16.mxu0 0
        %1823 = vmatpush2.bf16.msra.mxu0 0
        %1824 = vmatprep.subr.bf16.mxu0 0
        %1825 = vmatpush2.bf16.msra.mxu0 0
        %1826 = vmatprep.subr.bf16.mxu0 0
        %1827 = vmatpush2.bf16.msra.mxu0 0
        %1828 = vmatprep.subr.bf16.mxu0 0
        %1829 = vmatpush2.bf16.msra.mxu0 0
        %1830 = vmatprep.mubr.bf16.mxu0 0
        %1831 = vmatmul.mubr.bf16.gmra.mxu0 %v1775
        %v1832 = vpop.f32.mrf.mxu0
        %v1833 = vadd.f32 0.0, %v1832
        %v1834 = vpop.f32.mrf.mxu0
        %v1835 = vadd.f32 0.0, %v1834
        %v1836 = vpop.f32.mrf.mxu0
        %v1837 = vadd.f32 0.0, %v1836
        %v1838 = vpop.f32.mrf.mxu0
        %v1839 = vadd.f32 0.0, %v1838
        %1840 = vmatprep.mubr.bf16.mxu0 0
        %1841 = vmatmul.mubr.bf16.gmra.mxu0 %v1778
        %v1842 = vpop.f32.mrf.mxu0
        %v1843 = vadd.f32 0.0, %v1842
        %v1844 = vpop.f32.mrf.mxu0
        %v1845 = vadd.f32 0.0, %v1844
        %v1846 = vpop.f32.mrf.mxu0
        %v1847 = vadd.f32 0.0, %v1846
        %v1848 = vpop.f32.mrf.mxu0
        %v1849 = vadd.f32 0.0, %v1848
        %1850 = vmatprep.mubr.bf16.mxu0 0
        %1851 = vmatmul.mubr.bf16.gmra.mxu0 %v1781
        %v1852 = vpop.f32.mrf.mxu0
        %v1853 = vadd.f32 0.0, %v1852
        %v1854 = vpop.f32.mrf.mxu0
        %v1855 = vadd.f32 0.0, %v1854
        %v1856 = vpop.f32.mrf.mxu0
        %v1857 = vadd.f32 0.0, %v1856
        %v1858 = vpop.f32.mrf.mxu0
        %v1859 = vadd.f32 0.0, %v1858
        %1860 = vmatprep.mubr.bf16.mxu0 0
        %1861 = vmatmul.mubr.bf16.gmra.mxu0 %v1784
        %v1862 = vpop.f32.mrf.mxu0
        %v1863 = vadd.f32 0.0, %v1862
        %v1864 = vpop.f32.mrf.mxu0
        %v1865 = vadd.f32 0.0, %v1864
        %v1866 = vpop.f32.mrf.mxu0
        %v1867 = vadd.f32 0.0, %v1866
        %v1868 = vpop.f32.mrf.mxu0
        %v1869 = vadd.f32 0.0, %v1868
        %1870 = vmatprep.mubr.bf16.mxu0 0
        %1871 = vmatmul.mubr.bf16.gmra.mxu0 %v1787
        %v1872 = vpop.f32.mrf.mxu0
        %v1873 = vadd.f32 0.0, %v1872
        %v1874 = vpop.f32.mrf.mxu0
        %v1875 = vadd.f32 0.0, %v1874
        %v1876 = vpop.f32.mrf.mxu0
        %v1877 = vadd.f32 0.0, %v1876
        %v1878 = vpop.f32.mrf.mxu0
        %v1879 = vadd.f32 0.0, %v1878
        %1880 = vmatprep.mubr.bf16.mxu0 0
        %1881 = vmatmul.mubr.bf16.gmra.mxu0 %v1790
        %v1882 = vpop.f32.mrf.mxu0
        %v1883 = vadd.f32 0.0, %v1882
        %v1884 = vpop.f32.mrf.mxu0
        %v1885 = vadd.f32 0.0, %v1884
        %v1886 = vpop.f32.mrf.mxu0
        %v1887 = vadd.f32 0.0, %v1886
        %v1888 = vpop.f32.mrf.mxu0
        %v1889 = vadd.f32 0.0, %v1888
        %1890 = vmatprep.mubr.bf16.mxu0 0
        %1891 = vmatmul.mubr.bf16.gmra.mxu0 %v1793
        %v1892 = vpop.f32.mrf.mxu0
        %v1893 = vadd.f32 0.0, %v1892
        %v1894 = vpop.f32.mrf.mxu0
        %v1895 = vadd.f32 0.0, %v1894
        %v1896 = vpop.f32.mrf.mxu0
        %v1897 = vadd.f32 0.0, %v1896
        %v1898 = vpop.f32.mrf.mxu0
        %v1899 = vadd.f32 0.0, %v1898
        %1900 = vmatprep.mubr.bf16.mxu0 0
        %1901 = vmatmul.mubr.bf16.gmra.mxu0 %v1796
        %v1902 = vpop.f32.mrf.mxu0
        %v1903 = vadd.f32 0.0, %v1902
        %v1904 = vpop.f32.mrf.mxu0
        %v1905 = vadd.f32 0.0, %v1904
        %v1906 = vpop.f32.mrf.mxu0
        %v1907 = vadd.f32 0.0, %v1906
        %v1908 = vpop.f32.mrf.mxu0
        %v1909 = vadd.f32 0.0, %v1908
        %1910 = vdwg.mxu0
        %v1911 = vmax.f32 %v1833, %v1835
        %1912 = vmax.xlane.f32.xlu0 %v1911
        %v1913 = vpop.xlane.xlu0 %1912
        %v1914 = vmax.f32 %v1837, %v1839
        %1915 = vmax.xlane.f32.xlu0 %v1914
        %v1916 = vpop.xlane.xlu0 %1915
        %v1917 = vmax.f32 %v1843, %v1845
        %1918 = vmax.xlane.f32.xlu0 %v1917
        %v1919 = vpop.xlane.xlu0 %1918
        %v1920 = vmax.f32 %v1847, %v1849
        %1921 = vmax.xlane.f32.xlu0 %v1920
        %v1922 = vpop.xlane.xlu0 %1921
        %v1923 = vmax.f32 %v1853, %v1855
        %1924 = vmax.xlane.f32.xlu0 %v1923
        %v1925 = vpop.xlane.xlu0 %1924
        %v1926 = vmax.f32 %v1857, %v1859
        %1927 = vmax.xlane.f32.xlu0 %v1926
        %v1928 = vpop.xlane.xlu0 %1927
        %v1929 = vmax.f32 %v1863, %v1865
        %1930 = vmax.xlane.f32.xlu0 %v1929
        %v1931 = vpop.xlane.xlu0 %1930
        %v1932 = vmax.f32 %v1867, %v1869
        %1933 = vmax.xlane.f32.xlu0 %v1932
        %v1934 = vpop.xlane.xlu0 %1933
        %v1935 = vmax.f32 %v1873, %v1875
        %1936 = vmax.xlane.f32.xlu0 %v1935
        %v1937 = vpop.xlane.xlu0 %1936
        %v1938 = vmax.f32 %v1877, %v1879
        %1939 = vmax.xlane.f32.xlu0 %v1938
        %v1940 = vpop.xlane.xlu0 %1939
        %v1941 = vmax.f32 %v1883, %v1885
        %1942 = vmax.xlane.f32.xlu0 %v1941
        %v1943 = vpop.xlane.xlu0 %1942
        %v1944 = vmax.f32 %v1887, %v1889
        %1945 = vmax.xlane.f32.xlu0 %v1944
        %v1946 = vpop.xlane.xlu0 %1945
        %v1947 = vmax.f32 %v1893, %v1895
        %1948 = vmax.xlane.f32.xlu0 %v1947
        %v1949 = vpop.xlane.xlu0 %1948
        %v1950 = vmax.f32 %v1897, %v1899
        %1951 = vmax.xlane.f32.xlu0 %v1950
        %v1952 = vpop.xlane.xlu0 %1951
        %v1953 = vmax.f32 %v1903, %v1905
        %1954 = vmax.xlane.f32.xlu0 %v1953
        %v1955 = vpop.xlane.xlu0 %1954
        %v1956 = vmax.f32 %v1907, %v1909
        %1957 = vmax.xlane.f32.xlu0 %v1956
        %v1958 = vpop.xlane.xlu0 %1957
        %v1959 = vsub.f32 %v1833, %v1913
        %v1960 = vsub.f32 %v1835, %v1913
        %v1961 = vsub.f32 %v1837, %v1916
        %v1962 = vsub.f32 %v1839, %v1916
        %v1963 = vsub.f32 %v1843, %v1919
        %v1964 = vsub.f32 %v1845, %v1919
        %v1965 = vsub.f32 %v1847, %v1922
        %v1966 = vsub.f32 %v1849, %v1922
        %v1967 = vsub.f32 %v1853, %v1925
        %v1968 = vsub.f32 %v1855, %v1925
        %v1969 = vsub.f32 %v1857, %v1928
        %v1970 = vsub.f32 %v1859, %v1928
        %v1971 = vsub.f32 %v1863, %v1931
        %v1972 = vsub.f32 %v1865, %v1931
        %v1973 = vsub.f32 %v1867, %v1934
        %v1974 = vsub.f32 %v1869, %v1934
        %v1975 = vsub.f32 %v1873, %v1937
        %v1976 = vsub.f32 %v1875, %v1937
        %v1977 = vsub.f32 %v1877, %v1940
        %v1978 = vsub.f32 %v1879, %v1940
        %v1979 = vsub.f32 %v1883, %v1943
        %v1980 = vsub.f32 %v1885, %v1943
        %v1981 = vsub.f32 %v1887, %v1946
        %v1982 = vsub.f32 %v1889, %v1946
        %v1983 = vsub.f32 %v1893, %v1949
        %v1984 = vsub.f32 %v1895, %v1949
        %v1985 = vsub.f32 %v1897, %v1952
        %v1986 = vsub.f32 %v1899, %v1952
        %v1987 = vsub.f32 %v1903, %v1955
        %v1988 = vsub.f32 %v1905, %v1955
        %v1989 = vsub.f32 %v1907, %v1958
        %v1990 = vsub.f32 %v1909, %v1958
        %v1991 = vmul.f32 %v1959, 1.442695
        %v1992 = vpow.pop %v1991
        %v1993 = vmul.f32 %v1960, 1.442695
        %v1994 = vpow.pop %v1993
        %v1995 = vmul.f32 %v1961, 1.442695
        %v1996 = vpow.pop %v1995
        %v1997 = vmul.f32 %v1962, 1.442695
        %v1998 = vpow.pop %v1997
        %v1999 = vmul.f32 %v1963, 1.442695
        %v2000 = vpow.pop %v1999
        %v2001 = vmul.f32 %v1964, 1.442695
        %v2002 = vpow.pop %v2001
        %v2003 = vmul.f32 %v1965, 1.442695
        %v2004 = vpow.pop %v2003
        %v2005 = vmul.f32 %v1966, 1.442695
        %v2006 = vpow.pop %v2005
        %v2007 = vmul.f32 %v1967, 1.442695
        %v2008 = vpow.pop %v2007
        %v2009 = vmul.f32 %v1968, 1.442695
        %v2010 = vpow.pop %v2009
        %v2011 = vmul.f32 %v1969, 1.442695
        %v2012 = vpow.pop %v2011
        %v2013 = vmul.f32 %v1970, 1.442695
        %v2014 = vpow.pop %v2013
        %v2015 = vmul.f32 %v1971, 1.442695
        %v2016 = vpow.pop %v2015
        %v2017 = vmul.f32 %v1972, 1.442695
        %v2018 = vpow.pop %v2017
        %v2019 = vmul.f32 %v1973, 1.442695
        %v2020 = vpow.pop %v2019
        %v2021 = vmul.f32 %v1974, 1.442695
        %v2022 = vpow.pop %v2021
        %v2023 = vmul.f32 %v1975, 1.442695
        %v2024 = vpow.pop %v2023
        %v2025 = vmul.f32 %v1976, 1.442695
        %v2026 = vpow.pop %v2025
        %v2027 = vmul.f32 %v1977, 1.442695
        %v2028 = vpow.pop %v2027
        %v2029 = vmul.f32 %v1978, 1.442695
        %v2030 = vpow.pop %v2029
        %v2031 = vmul.f32 %v1979, 1.442695
        %v2032 = vpow.pop %v2031
        %v2033 = vmul.f32 %v1980, 1.442695
        %v2034 = vpow.pop %v2033
        %v2035 = vmul.f32 %v1981, 1.442695
        %v2036 = vpow.pop %v2035
        %v2037 = vmul.f32 %v1982, 1.442695
        %v2038 = vpow.pop %v2037
        %v2039 = vmul.f32 %v1983, 1.442695
        %v2040 = vpow.pop %v2039
        %v2041 = vmul.f32 %v1984, 1.442695
        %v2042 = vpow.pop %v2041
        %v2043 = vmul.f32 %v1985, 1.442695
        %v2044 = vpow.pop %v2043
        %v2045 = vmul.f32 %v1986, 1.442695
        %v2046 = vpow.pop %v2045
        %v2047 = vmul.f32 %v1987, 1.442695
        %v2048 = vpow.pop %v2047
        %v2049 = vmul.f32 %v1988, 1.442695
        %v2050 = vpow.pop %v2049
        %v2051 = vmul.f32 %v1989, 1.442695
        %v2052 = vpow.pop %v2051
        %v2053 = vmul.f32 %v1990, 1.442695
        %v2054 = vpow.pop %v2053
        %v2055 = vadd.f32 %v1992, %v1994
        %2056 = vadd.xlane.f32.xlu0 %v2055
        %v2057 = vpop.xlane.xlu0 %2056
        %v2058 = vadd.f32 %v1996, %v1998
        %2059 = vadd.xlane.f32.xlu0 %v2058
        %v2060 = vpop.xlane.xlu0 %2059
        %v2061 = vadd.f32 %v2000, %v2002
        %2062 = vadd.xlane.f32.xlu0 %v2061
        %v2063 = vpop.xlane.xlu0 %2062
        %v2064 = vadd.f32 %v2004, %v2006
        %2065 = vadd.xlane.f32.xlu0 %v2064
        %v2066 = vpop.xlane.xlu0 %2065
        %v2067 = vadd.f32 %v2008, %v2010
        %2068 = vadd.xlane.f32.xlu0 %v2067
        %v2069 = vpop.xlane.xlu0 %2068
        %v2070 = vadd.f32 %v2012, %v2014
        %2071 = vadd.xlane.f32.xlu0 %v2070
        %v2072 = vpop.xlane.xlu0 %2071
        %v2073 = vadd.f32 %v2016, %v2018
        %2074 = vadd.xlane.f32.xlu0 %v2073
        %v2075 = vpop.xlane.xlu0 %2074
        %v2076 = vadd.f32 %v2020, %v2022
        %2077 = vadd.xlane.f32.xlu0 %v2076
        %v2078 = vpop.xlane.xlu0 %2077
        %v2079 = vadd.f32 %v2024, %v2026
        %2080 = vadd.xlane.f32.xlu0 %v2079
        %v2081 = vpop.xlane.xlu0 %2080
        %v2082 = vadd.f32 %v2028, %v2030
        %2083 = vadd.xlane.f32.xlu0 %v2082
        %v2084 = vpop.xlane.xlu0 %2083
        %v2085 = vadd.f32 %v2032, %v2034
        %2086 = vadd.xlane.f32.xlu0 %v2085
        %v2087 = vpop.xlane.xlu0 %2086
        %v2088 = vadd.f32 %v2036, %v2038
        %2089 = vadd.xlane.f32.xlu0 %v2088
        %v2090 = vpop.xlane.xlu0 %2089
        %v2091 = vadd.f32 %v2040, %v2042
        %2092 = vadd.xlane.f32.xlu0 %v2091
        %v2093 = vpop.xlane.xlu0 %2092
        %v2094 = vadd.f32 %v2044, %v2046
        %2095 = vadd.xlane.f32.xlu0 %v2094
        %v2096 = vpop.xlane.xlu0 %2095
        %v2097 = vadd.f32 %v2048, %v2050
        %2098 = vadd.xlane.f32.xlu0 %v2097
        %v2099 = vpop.xlane.xlu0 %2098
        %v2100 = vadd.f32 %v2052, %v2054
        %2101 = vadd.xlane.f32.xlu0 %v2100
        %v2102 = vpop.xlane.xlu0 %2101
        %v2103 = vrcp.pop %v2057
        %v2104 = vrcp.pop %v2060
        %v2105 = vrcp.pop %v2063
        %v2106 = vrcp.pop %v2066
        %v2107 = vrcp.pop %v2069
        %v2108 = vrcp.pop %v2072
        %v2109 = vrcp.pop %v2075
        %v2110 = vrcp.pop %v2078
        %v2111 = vrcp.pop %v2081
        %v2112 = vrcp.pop %v2084
        %v2113 = vrcp.pop %v2087
        %v2114 = vrcp.pop %v2090
        %v2115 = vrcp.pop %v2093
        %v2116 = vrcp.pop %v2096
        %v2117 = vrcp.pop %v2099
        %v2118 = vrcp.pop %v2102
        %v2119 = vmul.f32 %v1992, %v2103
        %v2120 = vmul.f32 %v1994, %v2103
        %v2121 = vmul.f32 %v1996, %v2104
        %v2122 = vmul.f32 %v1998, %v2104
        %v2123 = vmul.f32 %v2000, %v2105
        %v2124 = vmul.f32 %v2002, %v2105
        %v2125 = vmul.f32 %v2004, %v2106
        %v2126 = vmul.f32 %v2006, %v2106
        %v2127 = vmul.f32 %v2008, %v2107
        %v2128 = vmul.f32 %v2010, %v2107
        %v2129 = vmul.f32 %v2012, %v2108
        %v2130 = vmul.f32 %v2014, %v2108
        %v2131 = vmul.f32 %v2016, %v2109
        %v2132 = vmul.f32 %v2018, %v2109
        %v2133 = vmul.f32 %v2020, %v2110
        %v2134 = vmul.f32 %v2022, %v2110
        %v2135 = vmul.f32 %v2024, %v2111
        %v2136 = vmul.f32 %v2026, %v2111
        %v2137 = vmul.f32 %v2028, %v2112
        %v2138 = vmul.f32 %v2030, %v2112
        %v2139 = vmul.f32 %v2032, %v2113
        %v2140 = vmul.f32 %v2034, %v2113
        %v2141 = vmul.f32 %v2036, %v2114
        %v2142 = vmul.f32 %v2038, %v2114
        %v2143 = vmul.f32 %v2040, %v2115
        %v2144 = vmul.f32 %v2042, %v2115
        %v2145 = vmul.f32 %v2044, %v2116
        %v2146 = vmul.f32 %v2046, %v2116
        %v2147 = vmul.f32 %v2048, %v2117
        %v2148 = vmul.f32 %v2050, %v2117
        %v2149 = vmul.f32 %v2052, %v2118
        %v2150 = vmul.f32 %v2054, %v2118
        %v2151 = vpack.c.bf16 %v2121, %v2119
        %v2152 = vpack.c.bf16 %v2122, %v2120
        %v2153 = vpack.c.bf16 %v2125, %v2123
        %v2154 = vpack.c.bf16 %v2126, %v2124
        %v2155 = vpack.c.bf16 %v2129, %v2127
        %v2156 = vpack.c.bf16 %v2130, %v2128
        %v2157 = vpack.c.bf16 %v2133, %v2131
        %v2158 = vpack.c.bf16 %v2134, %v2132
        %v2159 = vpack.c.bf16 %v2137, %v2135
        %v2160 = vpack.c.bf16 %v2138, %v2136
        %v2161 = vpack.c.bf16 %v2141, %v2139
        %v2162 = vpack.c.bf16 %v2142, %v2140
        %v2163 = vpack.c.bf16 %v2145, %v2143
        %v2164 = vpack.c.bf16 %v2146, %v2144
        %v2165 = vpack.c.bf16 %v2149, %v2147
        %v2166 = vpack.c.bf16 %v2150, %v2148
        %v2169 = vunpack.c.l.b16 %v1739
        %v2170 = vunpack.c.h.b16 %v1739
        %v2171 = vunpack.c.l.b16 %v1740
        %v2172 = vunpack.c.h.b16 %v1740
        %v2173 = vpack.c.b16 %v2171, %v2169
        %v2174 = vpack.c.b16 %v2172, %v2170
        %2177 = vmatprep.subr.bf16.mxu0 %v2166
        %2178 = vmatpush1.bf16.xpose.msra.mxu0 %v2165
        %2179 = vmatprep.subr.bf16.mxu0 %v2164
        %2180 = vmatpush1.bf16.xpose.msra.mxu0 %v2163
        %2181 = vmatprep.subr.bf16.mxu0 %v2162
        %2182 = vmatpush1.bf16.xpose.msra.mxu0 %v2161
        %2183 = vmatprep.subr.bf16.mxu0 %v2160
        %2184 = vmatpush1.bf16.xpose.msra.mxu0 %v2159
        %2185 = vmatprep.subr.bf16.mxu0 %v2158
        %2186 = vmatpush1.bf16.xpose.msra.mxu0 %v2157
        %2187 = vmatprep.subr.bf16.mxu0 %v2156
        %2188 = vmatpush1.bf16.xpose.msra.mxu0 %v2155
        %2189 = vmatprep.subr.bf16.mxu0 %v2154
        %2190 = vmatpush1.bf16.xpose.msra.mxu0 %v2153
        %2191 = vmatprep.subr.bf16.mxu0 %v2152
        %2192 = vmatpush1.bf16.xpose.msra.mxu0 %v2151
        %2193 = vmatprep.subr.bf16.mxu0 0
        %2194 = vmatpush2.bf16.xpose.msra.mxu0 0
        %2195 = vmatprep.subr.bf16.mxu0 0
        %2196 = vmatpush2.bf16.xpose.msra.mxu0 0
        %2197 = vmatprep.subr.bf16.mxu0 0
        %2198 = vmatpush2.bf16.xpose.msra.mxu0 0
        %2199 = vmatprep.subr.bf16.mxu0 0
        %2200 = vmatpush2.bf16.xpose.msra.mxu0 0
        %2201 = vmatprep.subr.bf16.mxu0 0
        %2202 = vmatpush2.bf16.xpose.msra.mxu0 0
        %2203 = vmatprep.subr.bf16.mxu0 0
        %2204 = vmatpush2.bf16.xpose.msra.mxu0 0
        %2205 = vmatprep.subr.bf16.mxu0 0
        %2206 = vmatpush2.bf16.xpose.msra.mxu0 0
        %2207 = vmatprep.subr.bf16.mxu0 0
        %2208 = vmatpush2.bf16.xpose.msra.mxu0 0
        %2209 = vmatprep.mubr.bf16.mxu0 %v2174
        %2210 = vmatmul.mubr.bf16.gmra.mxu0 %v2173
        %v2211 = vpop.f32.mrf.mxu0
        %v2212 = vadd.f32 0.0, %v2211
        %v2213 = vpop.f32.mrf.mxu0
        %v2214 = vpop.f32.mrf.mxu0
        %v2215 = vadd.f32 0.0, %v2214
        %v2216 = vpop.f32.mrf.mxu0
        %2217 = vdwg.mxu0
        %v2218 = vpack.c.bf16 %v2215, %v2212
        %v2220 = vunpack.c.l.b16 %v2218
        %v2221 = vunpack.c.h.b16 %v2218
        %v2222 = vpack.c.b16 %v2220, %v2220
        %v2223 = vpack.c.b16 %v2221, %v2221
        %s2226 = smul.addr %s1726, 4
        %s2227 = scalar_lea.vmem [#allocation6], %s2226
        %2228 = vst [vmem:[%s2227] sm:$0xf] %v2222
        %2229 = vst [vmem:[%s2227 + $0x4] sm:$0xf] %v2223
        %p2230 = scmp.eq.s32.totalorder %s38, 3
        // Predicated region
        $region81: #{tpu_custom_call.1} parent=67 // pred_check
          %p2231 = pneg %p2230
        $region82: #{tpu_custom_call.1} parent=67 // pred_check_branch
          %2233 = sbr.rel (%p2231) target = $region84
        $region83: #{tpu_custom_call.1} parent=67 // pred_region
          %v2234 = vld [vmem:[%s10] sm:$0xf]
          %v2235 = vld [vmem:[%s10 + $0x4] sm:$0xf]
          %v2236 = vld [vmem:[%s10 + $0x8] sm:$0xf]
          %v2237 = vld [vmem:[%s10 + $0xc] sm:$0xf]
          %v2238 = vld [vmem:[%s10 + $0x10] sm:$0xf]
          %v2239 = vld [vmem:[%s10 + $0x14] sm:$0xf]
          %v2240 = vld [vmem:[%s10 + $0x18] sm:$0xf]
          %v2241 = vld [vmem:[%s10 + $0x1c] sm:$0xf]
          %v2242 = vld [vmem:[#allocation6] sm:$0xf]
          %v2243 = vld [vmem:[#allocation6 + $0x4] sm:$0xf]
          %v2244 = vld [vmem:[#allocation6 + $0x8] sm:$0xf]
          %v2245 = vld [vmem:[#allocation6 + $0xc] sm:$0xf]
          %v2246 = vld [vmem:[#allocation6 + $0x10] sm:$0xf]
          %v2247 = vld [vmem:[#allocation6 + $0x14] sm:$0xf]
          %v2248 = vld [vmem:[#allocation6 + $0x18] sm:$0xf]
          %v2249 = vld [vmem:[#allocation6 + $0x1c] sm:$0xf]
          %v2258 = vunpack.c.l.b16 %v2234
          %v2259 = vunpack.c.l.b16 %v2235
          %v2260 = vunpack.c.l.b16 %v2236
          %v2261 = vunpack.c.l.b16 %v2237
          %v2262 = vunpack.c.l.b16 %v2238
          %v2263 = vunpack.c.l.b16 %v2239
          %v2264 = vunpack.c.l.b16 %v2240
          %v2265 = vunpack.c.l.b16 %v2241
          %v2266 = vpack.c.b16 %v2259, %v2258
          %v2267 = vpack.c.b16 %v2261, %v2260
          %v2268 = vpack.c.b16 %v2263, %v2262
          %v2269 = vpack.c.b16 %v2265, %v2264
          %2274 = vxpose.xlu0.c.b16.start [1/8] %v2266, 128
          %2275 = vxpose.xlu0.c.b16.cont [2/8] %v2267, 128
          %2276 = vxpose.xlu0.c.b16.cont [3/8] %v2268, 128
          %2277 = vxpose.xlu0.c.b16.cont [4/8] %v2269, 128
          %2278 = vxpose.xlu0.c.b16.cont [5/8] 0, 128
          %2279 = vxpose.xlu0.c.b16.cont [6/8] 0, 128
          %2280 = vxpose.xlu0.c.b16.cont [7/8] 0, 128
          %2281 = vxpose.xlu0.c.b16.end [8/8] 0, 128
          %v2282 = vpop.trf.xlu0
          %v2283 = vpop.trf.xlu0
          %v2284 = vpop.trf.xlu0
          %v2285 = vpop.trf.xlu0
          %v2286 = vpop.trf.xlu0
          %v2287 = vpop.trf.xlu0
          %v2288 = vpop.trf.xlu0
          %v2289 = vpop.trf.xlu0
          %v2298 = vunpack.c.l.b16 %v2242
          %v2299 = vunpack.c.l.b16 %v2243
          %v2300 = vunpack.c.l.b16 %v2244
          %v2301 = vunpack.c.l.b16 %v2245
          %v2302 = vunpack.c.l.b16 %v2246
          %v2303 = vunpack.c.l.b16 %v2247
          %v2304 = vunpack.c.l.b16 %v2248
          %v2305 = vunpack.c.l.b16 %v2249
          %v2306 = vpack.c.b16 %v2299, %v2298
          %v2307 = vpack.c.b16 %v2301, %v2300
          %v2308 = vpack.c.b16 %v2303, %v2302
          %v2309 = vpack.c.b16 %v2305, %v2304
          %vm2314 = vcmask 523264
          %v2316 = vsel %vm2314, %v2282, 0
          %v2319 = vsel %vm2314, %v2283, 0
          %v2322 = vsel %vm2314, %v2284, 0
          %v2325 = vsel %vm2314, %v2285, 0
          %2327 = vmatprep.subr.bf16.mxu0 0
          %2328 = vmatpush1.bf16.msra.mxu0 0
          %2329 = vmatprep.subr.bf16.mxu0 0
          %2330 = vmatpush1.bf16.msra.mxu0 0
          %2331 = vmatprep.subr.bf16.mxu0 0
          %2332 = vmatpush1.bf16.msra.mxu0 0
          %2333 = vmatprep.subr.bf16.mxu0 0
          %2334 = vmatpush1.bf16.msra.mxu0 0
          %2335 = vmatprep.subr.bf16.mxu0 0
          %2336 = vmatpush1.bf16.msra.mxu0 %v2309
          %2337 = vmatprep.subr.bf16.mxu0 0
          %2338 = vmatpush1.bf16.msra.mxu0 %v2308
          %2339 = vmatprep.subr.bf16.mxu0 0
          %2340 = vmatpush1.bf16.msra.mxu0 %v2307
          %2341 = vmatprep.subr.bf16.mxu0 0
          %2342 = vmatpush1.bf16.msra.mxu0 %v2306
          %2343 = vmatprep.subr.bf16.mxu0 0
          %2344 = vmatpush2.bf16.msra.mxu0 0
          %2345 = vmatprep.subr.bf16.mxu0 0
          %2346 = vmatpush2.bf16.msra.mxu0 0
          %2347 = vmatprep.subr.bf16.mxu0 0
          %2348 = vmatpush2.bf16.msra.mxu0 0
          %2349 = vmatprep.subr.bf16.mxu0 0
          %2350 = vmatpush2.bf16.msra.mxu0 0
          %2351 = vmatprep.subr.bf16.mxu0 0
          %2352 = vmatpush2.bf16.msra.mxu0 0
          %2353 = vmatprep.subr.bf16.mxu0 0
          %2354 = vmatpush2.bf16.msra.mxu0 0
          %2355 = vmatprep.subr.bf16.mxu0 0
          %2356 = vmatpush2.bf16.msra.mxu0 0
          %2357 = vmatprep.subr.bf16.mxu0 0
          %2358 = vmatpush2.bf16.msra.mxu0 0
          %2359 = vmatprep.mubr.bf16.mxu0 0
          %2360 = vmatmul.mubr.bf16.gmra.mxu0 %v2316
          %v2361 = vpop.f32.mrf.mxu0
          %v2362 = vadd.f32 0.0, %v2361
          %v2363 = vpop.f32.mrf.mxu0
          %v2364 = vpop.f32.mrf.mxu0
          %v2365 = vadd.f32 0.0, %v2364
          %v2366 = vpop.f32.mrf.mxu0
          %2367 = vmatprep.mubr.bf16.mxu0 0
          %2368 = vmatmul.mubr.bf16.gmra.mxu0 %v2319
          %v2369 = vpop.f32.mrf.mxu0
          %v2370 = vadd.f32 0.0, %v2369
          %v2371 = vpop.f32.mrf.mxu0
          %v2372 = vpop.f32.mrf.mxu0
          %v2373 = vadd.f32 0.0, %v2372
          %v2374 = vpop.f32.mrf.mxu0
          %2375 = vmatprep.mubr.bf16.mxu0 0
          %2376 = vmatmul.mubr.bf16.gmra.mxu0 %v2322
          %v2377 = vpop.f32.mrf.mxu0
          %v2378 = vadd.f32 0.0, %v2377
          %v2379 = vpop.f32.mrf.mxu0
          %v2380 = vpop.f32.mrf.mxu0
          %v2381 = vadd.f32 0.0, %v2380
          %v2382 = vpop.f32.mrf.mxu0
          %2383 = vmatprep.mubr.bf16.mxu0 0
          %2384 = vmatmul.mubr.bf16.gmra.mxu0 %v2325
          %v2385 = vpop.f32.mrf.mxu0
          %v2386 = vadd.f32 0.0, %v2385
          %v2387 = vpop.f32.mrf.mxu0
          %v2388 = vpop.f32.mrf.mxu0
          %v2389 = vadd.f32 0.0, %v2388
          %v2390 = vpop.f32.mrf.mxu0
          %2391 = vdwg.mxu0
          %s2392 = sshra.s32 %s1491, 7
          %s2393 = sand.u32 %s1491, 127
          %s2394 = smul.addr %s2392, 8
          %s2395 = scalar_lea.vmem %s427, %s2394 [#allocation7]
          %v2396 = vld [vmem:[%s2395] sm:$0xff]
          %v2397 = vld [vmem:[%s2395 + $0x10] sm:$0xff]
          %v2398 = vld [vmem:[%s2395 + $0x20] sm:$0xff]
          %v2399 = vld [vmem:[%s2395 + $0x30] sm:$0xff]
          %v2400 = vld [vmem:[%s2395 + $0x40] sm:$0xff]
          %v2401 = vld [vmem:[%s2395 + $0x50] sm:$0xff]
          %v2402 = vld [vmem:[%s2395 + $0x60] sm:$0xff]
          %v2403 = vld [vmem:[%s2395 + $0x70] sm:$0xff]
          %v2404 = vadd.f32 %v2396, %v2362
          %v2405 = vadd.f32 %v2397, %v2365
          %v2406 = vadd.f32 %v2398, %v2370
          %v2407 = vadd.f32 %v2399, %v2373
          %v2408 = vadd.f32 %v2400, %v2378
          %v2409 = vadd.f32 %v2401, %v2381
          %v2410 = vadd.f32 %v2402, %v2386
          %v2411 = vadd.f32 %v2403, %v2389
          %v2412 = vld [vmem:[%s11] sm:$0xff]
          %v2413 = vld [vmem:[%s11 + $0x8] sm:$0xff]
          %v2414 = vld [vmem:[%s11 + $0x10] sm:$0xff]
          %v2415 = vld [vmem:[%s11 + $0x18] sm:$0xff]
          %v2416 = vld [vmem:[%s11 + $0x20] sm:$0xff]
          %v2417 = vld [vmem:[%s11 + $0x28] sm:$0xff]
          %v2418 = vld [vmem:[%s11 + $0x30] sm:$0xff]
          %v2419 = vld [vmem:[%s11 + $0x38] sm:$0xff]
          %2421 = vset.pattern.permute.xlu0 0
          %2422 = vperm.xlu0 %2421, %v2412
          %v2423 = vpop.permute.xlu0 %2422
          %2426 = vset.pattern.permute.xlu0 0
          %2427 = vperm.xlu0 %2426, %v2413
          %v2428 = vpop.permute.xlu0 %2427
          %2431 = vset.pattern.permute.xlu0 0
          %2432 = vperm.xlu0 %2431, %v2414
          %v2433 = vpop.permute.xlu0 %2432
          %2436 = vset.pattern.permute.xlu0 0
          %2437 = vperm.xlu0 %2436, %v2415
          %v2438 = vpop.permute.xlu0 %2437
          %2441 = vset.pattern.permute.xlu0 0
          %2442 = vperm.xlu0 %2441, %v2416
          %v2443 = vpop.permute.xlu0 %2442
          %2446 = vset.pattern.permute.xlu0 0
          %2447 = vperm.xlu0 %2446, %v2417
          %v2448 = vpop.permute.xlu0 %2447
          %2451 = vset.pattern.permute.xlu0 0
          %2452 = vperm.xlu0 %2451, %v2418
          %v2453 = vpop.permute.xlu0 %2452
          %2456 = vset.pattern.permute.xlu0 0
          %2457 = vperm.xlu0 %2456, %v2419
          %v2458 = vpop.permute.xlu0 %2457
          %v2460 = vadd.f32 %v2404, %v2423
          %v2461 = vadd.f32 %v2405, %v2428
          %v2462 = vadd.f32 %v2406, %v2433
          %v2463 = vadd.f32 %v2407, %v2438
          %v2464 = vadd.f32 %v2408, %v2443
          %v2465 = vadd.f32 %v2409, %v2448
          %v2466 = vadd.f32 %v2410, %v2453
          %v2467 = vadd.f32 %v2411, %v2458
          %2468 = vst [vmem:[%s467] sm:$0xff] %v2460
          %2469 = vst [vmem:[%s467 + $0x8] sm:$0xff] %v2461
          %2470 = vst [vmem:[%s467 + $0x10] sm:$0xff] %v2462
          %2471 = vst [vmem:[%s467 + $0x18] sm:$0xff] %v2463
          %2472 = vst [vmem:[%s467 + $0x20] sm:$0xff] %v2464
          %2473 = vst [vmem:[%s467 + $0x28] sm:$0xff] %v2465
          %2474 = vst [vmem:[%s467 + $0x30] sm:$0xff] %v2466
          %2475 = vst [vmem:[%s467 + $0x38] sm:$0xff] %v2467
        $region84: #{tpu_custom_call.1} parent=67 // pred_fallthru
          _
        %s2476 = sand.u32 %s328, 1
        %s2477 = scalar_lea.sflag [#allocation9], %s2476
        %s2478 = sand.u32 %s328, 1
        %s2479 = smul.addr %s2478, 64
        %s2480 = scalar_lea.vmem [#allocation10], %s2479
        // Predicated region
        $region85: #{tpu_custom_call.1} parent=67 // pred_check
          %p2481 = pneg %p338
        $region86: #{tpu_custom_call.1} parent=67 // pred_check_branch
          %2483 = sbr.rel (%p2481) target = $region88
        $region87: #{tpu_custom_call.1} parent=67 // pred_region
          %s2484 = smul.u32 %s36, 2
          %s2485 = sadd.s32 %s2484, %s37
          %s2487 = ssub.s32 1024, 1024
          %2488 = vsyncadd %s2477, %s2487
          %s2489 = smul.addr %s35, 32
          %s2490 = sadd.s32 %s2485, %s2489
          %s2491 = smul.addr %s2490, 128
          %s2492 = scalar_lea.hbm %s12, %s2491
          %s2493 = sshll.u32 %s2480, 4
          %s2494 = int_to_ptr.vmem [resolvable:$true] %s2493
          %2499 = dma.vmem_to_hbm [thread:$0]  %s2494, 1024, %s2492, %s2477, 128, 512, 8
        $region88: #{tpu_custom_call.1} parent=67 // pred_fallthru
          _
      $region68: #{tpu_custom_call.1} parent=5 // pred_fallthru
        _
      %p2500 = scmp.le.s32.totalorder 2, %s24
      // Predicated region
      $region89: #{tpu_custom_call.1} parent=5 // pred_check
        %p2501 = pneg %p2500
      $region90: #{tpu_custom_call.1} parent=5 // pred_check_branch
        %2503 = sbr.rel (%p2501) target = $region92
      $region91: #{tpu_custom_call.1} parent=5 // pred_region
        %s2504 = ssub.s32 %s24, 2
        // Predicated region
        $region93: #{tpu_custom_call.1} parent=91 // pred_check
          %p2505 = pneg %p344
        $region94: #{tpu_custom_call.1} parent=91 // pred_check_branch
          %2507 = sbr.rel (%p2505) target = $region96
        $region95: #{tpu_custom_call.1} parent=91 // pred_region
          %s2508 = sand.u32 %s329, 1
          %s2509 = scalar_lea.sflag [#allocation9], %s2508
          %s2510 = sand.u32 %s329, 1
          %s2511 = smul.addr %s2510, 64
          %s2512 = scalar_lea.vmem [#allocation10], %s2511
          %2513 = dma.done %s2509, 1024
        $region96: #{tpu_custom_call.1} parent=91 // pred_fallthru
          _
      $region92: #{tpu_custom_call.1} parent=5 // pred_fallthru
        _
    $region6: #{tpu_custom_call.1} parent=1 // loop_footer
      %s28 = sadd.s32 1, %s24
    $region7: #{tpu_custom_call.1} parent=1 // loop_footer_branch
      %23 = sbr.rel target = $region3
    $region8: #{tpu_custom_call.1} parent=1 // loop_exit
      _
    %2514 = vsyncpa [#allocation8], 1
    %s2515 = scalar_lea.sflag [#allocation8], 1
    %2516 = vsyncpa %s2515, 1
    %2517 = vsyncpa [#allocation9], 1
    %s2518 = scalar_lea.sflag [#allocation9], 1
    %2519 = vsyncpa %s2518, 1

</llo_original>
